<compile_context>
chip_gen: v7x
topology: tpu7x:2x2x1
jax: 0.10.0
libtpu: 0.0.40
codegen_flags: <defaults>
</compile_context>

<pallas_src>
import functools

import jax
import jax.numpy as jnp
from jax import lax
from jax.experimental import pallas as pl
from jax.experimental.pallas import tpu as pltpu


def _layernorm(x, gamma, beta, eps=1e-5):
    mu = jnp.mean(x, axis=-1, keepdims=True)
    var = jnp.mean(jnp.square(x - mu), axis=-1, keepdims=True)
    return (x - mu) * lax.rsqrt(var + eps) * gamma + beta


def transformer_layer_kernel(heads, dim_head,
                             x_ref, ln1g_ref, ln1b_ref, wqkv_ref, wout_ref, bo_ref,
                             ln2g_ref, ln2b_ref, w1_ref, b1_ref, w2_ref, b2_ref,
                             out_ref):
    layer = pl.program_id(1)

    # Layer 0 of each batch tile: seed the resident f32 activation (out_ref is
    # the accumulator; its block index ignores the depth axis so it stays in
    # VMEM across layers and is written back to HBM only once per batch tile).
    @pl.when(layer == 0)
    def _():
        out_ref[...] = x_ref[...].astype(out_ref.dtype)

    TB, N, D = out_ref.shape
    H, Dh = heads, dim_head
    HDh = H * Dh
    T = TB * N
    scale = float(Dh) ** -0.5

    x = out_ref[...]                                             # (TB, N, D) f32

    # ---------------- PreNorm + multi-head attention + residual ----------------
    xn = _layernorm(x, ln1g_ref[0], ln1b_ref[0])                 # (TB, N, D) f32
    xn_b = xn.reshape(T, D).astype(jnp.bfloat16)

    # Fused QKV projection: one bf16 MXU matmul, f32 accumulation.
    qkv = jnp.dot(xn_b, wqkv_ref[0],
                  preferred_element_type=jnp.float32)            # (T, 3*H*Dh) f32

    # Per-(head, batch) grouping via static lane slices + leading-axis stack.
    # Column layout is [Q (h d) | K (h d) | V (h d)], matching the PyTorch
    # chunk/rearrange order, so no wrapper repacking is needed.
    # (Slices are not 128-lane aligned for small Dh; inherent to these dims.)
    def head_stack(base, do_scale=False):
        parts = []
        for h in range(H):
            s = qkv[:, base + h * Dh: base + (h + 1) * Dh]       # (T, Dh) f32
            if do_scale:
                s = s * scale                                    # fold scale into q
            parts.append(s.astype(jnp.bfloat16))
        g = jnp.stack(parts, axis=0)                             # (H, T, Dh)
        return g.reshape(H * TB, N, Dh)                          # (G, N, Dh)

    q = head_stack(0, do_scale=True)
    k = head_stack(HDh)
    v = head_stack(2 * HDh)

    dots = jnp.einsum('gid,gjd->gij', q, k,
                      preferred_element_type=jnp.float32)        # (G, N, N) f32
    dots = dots - jnp.max(dots, axis=-1, keepdims=True)
    e = jnp.exp(dots)
    attn = e * pl.reciprocal(jnp.sum(e, axis=-1, keepdims=True), approx=True)
    o = jnp.einsum('gij,gjd->gid', attn.astype(jnp.bfloat16), v,
                   preferred_element_type=jnp.float32)           # (G, N, Dh) f32

    # (G, N, Dh) -> (T, H*Dh): order-preserving leading reshapes + lane concat.
    o4 = o.reshape(H, TB, N, Dh)
    o_cat = jnp.concatenate(
        [o4[h].reshape(T, Dh).astype(jnp.bfloat16) for h in range(H)], axis=-1)

    # Fused output projection: head reduction folded into the MXU contraction.
    proj = jnp.dot(o_cat, wout_ref[0],
                   preferred_element_type=jnp.float32) + bo_ref[0]   # (T, D) f32
    x = x + proj.reshape(TB, N, D)

    # ---------------- PreNorm + FeedForward (exact GELU) + residual ----------------
    xn = _layernorm(x, ln2g_ref[0], ln2b_ref[0])
    ff = jnp.dot(xn.reshape(T, D).astype(jnp.bfloat16), w1_ref[0],
                 preferred_element_type=jnp.float32) + b1_ref[0]     # (T, mlp) f32
    ff = 0.5 * ff * (1.0 + lax.erf(ff * jnp.float32(0.7071067811865476)))
    ff = jnp.dot(ff.astype(jnp.bfloat16), w2_ref[0],
                 preferred_element_type=jnp.float32) + b2_ref[0]     # (T, D) f32
    x = x + ff.reshape(TB, N, D)

    out_ref[...] = x.astype(out_ref.dtype)


def _auto_batch_tile(B, N, target_tokens=256):
    """Largest batch tile with <= target tokens (fills the MXU M dim) while
    keeping >=2 tiles on the parallel axis when B allows (v7x has 2 TCs)."""
    divisors = [d for d in range(1, B + 1) if B % d == 0]
    cands = [d for d in divisors if d * N <= target_tokens]
    tb = max(cands) if cands else 1
    if B > 1 and B // tb < 2:
        two_tile = [d for d in divisors if B // d >= 2]
        if two_tile:
            tb = max(two_tile)
    return tb


def transformer_forward(x, params, *, heads, dim_head, batch_tile=None):
    depth = params['w_qkv'].shape[0]
    B, N, D = x.shape
    if batch_tile is None:
        batch_tile = _auto_batch_tile(B, N)
    assert B % batch_tile == 0
    TB = batch_tile

    kernel = functools.partial(transformer_layer_kernel, heads, dim_head)

    act_spec = pl.BlockSpec((TB, N, D), lambda b, l: (b, 0, 0))

    def pspec(arr):
        nd = arr.ndim
        return pl.BlockSpec((1,) + arr.shape[1:],
                            lambda b, l, _nd=nd: (l,) + (0,) * (_nd - 1))

    # Weights are passed in their natural torch-equivalent layout (no repacking
    # needed: [Q|K|V] x (h d) columns match the kernel's per-head lane slices).
    weight_args = [params['ln1_g'], params['ln1_b'], params['w_qkv'], params['w_out'],
                   params['b_out'], params['ln2_g'], params['ln2_b'], params['w1'],
                   params['b1'], params['w2'], params['b2']]

    # Size the scoped VMEM to the actual device (v5e/v6e: 128 MiB, v7x: 64 MiB).
    try:
        cap = int(pltpu.get_tpu_info().vmem_capacity_bytes)
        vmem_limit = max(32 * 1024 * 1024, min(cap * 3 // 4, 100 * 1024 * 1024))
    except Exception:
        vmem_limit = 64 * 1024 * 1024

    return pl.pallas_call(
        kernel,
        out_shape=jax.ShapeDtypeStruct((B, N, D), jnp.float32),
        grid=(B // TB, depth),
        in_specs=[act_spec] + [pspec(a) for a in weight_args],
        out_specs=act_spec,
        compiler_params=pltpu.CompilerParams(
            dimension_semantics=("parallel", "arbitrary"),
            vmem_limit_bytes=vmem_limit),
    )(x, *weight_args)


def init_params(key, depth, dim, heads, dim_head, mlp_dim, scale=0.1):
    inner = heads * dim_head
    ks = jax.random.split(key, 6)

    def w(k, shape):
        # Matmul weights stored as bf16 (streamed weights dominate HBM traffic);
        # LN params / biases stay f32.
        return (scale * jax.random.normal(k, shape, jnp.float32)).astype(jnp.bfloat16)

    return {
        'ln1_g': jnp.ones((depth, 1, dim), jnp.float32),
        'ln1_b': jnp.zeros((depth, 1, dim), jnp.float32),
        'w_qkv': w(ks[0], (depth, dim, 3 * inner)),
        'w_out': w(ks[1], (depth, inner, dim)),
        'b_out': scale * jax.random.normal(ks[2], (depth, 1, dim), jnp.float32),
        'ln2_g': jnp.ones((depth, 1, dim), jnp.float32),
        'ln2_b': jnp.zeros((depth, 1, dim), jnp.float32),
        'w1': w(ks[3], (depth, dim, mlp_dim)),
        'b1': scale * jax.random.normal(ks[4], (depth, 1, mlp_dim), jnp.float32),
        'w2': w(ks[5], (depth, mlp_dim, dim)),
        'b2': jnp.zeros((depth, 1, dim), jnp.float32),
    }


def reference_forward(x, p, *, heads, dim_head):
    """Pure-JAX reference mirroring the PyTorch module (eval mode), f32 math."""
    p = {k: v.astype(jnp.float32) for k, v in p.items()}
    depth = p['w_qkv'].shape[0]
    inner = heads * dim_head
    B, N, _ = x.shape

    def ln(t, g, b):
        mu = t.mean(-1, keepdims=True)
        var = ((t - mu) ** 2).mean(-1, keepdims=True)
        return (t - mu) / jnp.sqrt(var + 1e-5) * g + b

    for l in range(depth):
        xn = ln(x, p['ln1_g'][l, 0], p['ln1_b'][l, 0])
        qkv = xn @ p['w_qkv'][l]
        q, k, v = jnp.split(qkv, 3, axis=-1)
        q = q.reshape(B, N, heads, dim_head).transpose(0, 2, 1, 3)
        k = k.reshape(B, N, heads, dim_head).transpose(0, 2, 1, 3)
        v = v.reshape(B, N, heads, dim_head).transpose(0, 2, 1, 3)
        dots = jnp.einsum('bhid,bhjd->bhij', q, k) * dim_head ** -0.5
        attn = jax.nn.softmax(dots, axis=-1)
        o = jnp.einsum('bhij,bhjd->bhid', attn, v).transpose(0, 2, 1, 3).reshape(B, N, inner)
        x = x + (o @ p['w_out'][l] + p['b_out'][l, 0])
        xn = ln(x, p['ln2_g'][l, 0], p['ln2_b'][l, 0])
        h = jax.nn.gelu(xn @ p['w1'][l] + p['b1'][l, 0], approximate=False)
        x = x + (h @ p['w2'][l] + p['b2'][l, 0])
    return x


if __name__ == "__main__":
    B, N = 2, 8
    dim, depth, heads, dim_head, mlp_dim = 32, 2, 4, 8, 64

    key = jax.random.PRNGKey(0)
    kx, kp = jax.random.split(key)
    x = jax.random.normal(kx, (B, N, dim), jnp.float32)
    params = init_params(kp, depth, dim, heads, dim_head, mlp_dim)

    y = transformer_forward(x, params, heads=heads, dim_head=dim_head)
    y = jax.block_until_ready(y)

    y_ref = reference_forward(x, params, heads=heads, dim_head=dim_head)
    assert y.shape == (B, N, dim)
    # Tolerance widened vs the f32-matmul version: activations are bf16-quantized
    # before each MXU matmul (f32 accumulation) and softmax uses approx reciprocal.
    max_err = float(jnp.max(jnp.abs(y - y_ref)))
    assert jnp.allclose(y, y_ref, atol=3e-2, rtol=3e-2), f"mismatch vs ref (max abs err {max_err})"

    print("KERNEL_OK")
</pallas_src>

<mosaic_0001>
module attributes {stable_mosaic.version = 11 : i64} {
  func.func @transformer_layer_kernel(%arg0: i32, %arg1: i32, %arg2: memref<1x8x32xf32, #tpu.memory_space<vmem>>, %arg3: memref<1x1x32xf32, #tpu.memory_space<vmem>>, %arg4: memref<1x1x32xf32, #tpu.memory_space<vmem>>, %arg5: memref<1x32x96xbf16, #tpu.memory_space<vmem>>, %arg6: memref<1x32x32xbf16, #tpu.memory_space<vmem>>, %arg7: memref<1x1x32xf32, #tpu.memory_space<vmem>>, %arg8: memref<1x1x32xf32, #tpu.memory_space<vmem>>, %arg9: memref<1x1x32xf32, #tpu.memory_space<vmem>>, %arg10: memref<1x32x64xbf16, #tpu.memory_space<vmem>>, %arg11: memref<1x1x64xf32, #tpu.memory_space<vmem>>, %arg12: memref<1x64x32xbf16, #tpu.memory_space<vmem>>, %arg13: memref<1x1x32xf32, #tpu.memory_space<vmem>>, %arg14: memref<1x8x32xf32, #tpu.memory_space<vmem>>) attributes {dimension_semantics = [#tpu.dimension_semantics<parallel>, #tpu.dimension_semantics<arbitrary>], iteration_bounds = array<i64: 2, 2>, scalar_prefetch = 0 : i64, scratch_operands = 0 : i64, tpu.core_type = #tpu.core_type<tc>, window_params = [{transform_indices = @transform_0, window_bounds = array<i64: 1, 8, 32>}, {transform_indices = @transform_1, window_bounds = array<i64: 1, 1, 32>}, {transform_indices = @transform_2, window_bounds = array<i64: 1, 1, 32>}, {transform_indices = @transform_3, window_bounds = array<i64: 1, 32, 96>}, {transform_indices = @transform_4, window_bounds = array<i64: 1, 32, 32>}, {transform_indices = @transform_5, window_bounds = array<i64: 1, 1, 32>}, {transform_indices = @transform_6, window_bounds = array<i64: 1, 1, 32>}, {transform_indices = @transform_7, window_bounds = array<i64: 1, 1, 32>}, {transform_indices = @transform_8, window_bounds = array<i64: 1, 32, 64>}, {transform_indices = @transform_9, window_bounds = array<i64: 1, 1, 64>}, {transform_indices = @transform_10, window_bounds = array<i64: 1, 64, 32>}, {transform_indices = @transform_11, window_bounds = array<i64: 1, 1, 32>}, {transform_indices = @transform_12, window_bounds = array<i64: 1, 8, 32>}]} {
    %c0_i32 = arith.constant 0 : i32
    %0 = arith.cmpi eq, %arg1, %c0_i32 : i32
    %1 = arith.extui %0 : i1 to i32
    %c0_i32_0 = arith.constant 0 : i32
    %2 = arith.cmpi ne, %1, %c0_i32_0 : i32
    scf.if %2 {
      %c0_63 = arith.constant 0 : index
      %c0_64 = arith.constant 0 : index
      %c0_65 = arith.constant 0 : index
      %180 = vector.load %arg2[%c0_63, %c0_64, %c0_65] : memref<1x8x32xf32, #tpu.memory_space<vmem>>, vector<1x8x32xf32>
      %c0_66 = arith.constant 0 : index
      %c0_67 = arith.constant 0 : index
      %c0_68 = arith.constant 0 : index
      %181 = vector.load %arg14[%c0_66, %c0_67, %c0_68] : memref<1x8x32xf32, #tpu.memory_space<vmem>>, vector<1x8x32xf32>
      tpu.vector_store %arg14[%c0_66, %c0_67, %c0_68], %180 {strides = array<i32>} : memref<1x8x32xf32, #tpu.memory_space<vmem>>, vector<1x8x32xf32>,
    } else {
    }
    %c0 = arith.constant 0 : index
    %c0_1 = arith.constant 0 : index
    %c0_2 = arith.constant 0 : index
    %3 = vector.load %arg14[%c0, %c0_1, %c0_2] : memref<1x8x32xf32, #tpu.memory_space<vmem>>, vector<1x8x32xf32>
    %c0_3 = arith.constant 0 : index
    %c0_4 = arith.constant 0 : index
    %c0_5 = arith.constant 0 : index
    %4 = vector.load %arg3[%c0_3, %c0_4, %c0_5] : memref<1x1x32xf32, #tpu.memory_space<vmem>>, vector<1x1x32xf32>
    %5 = vector.shape_cast %4 : vector<1x1x32xf32> to vector<1x32xf32>
    %c0_6 = arith.constant 0 : index
    %c0_7 = arith.constant 0 : index
    %c0_8 = arith.constant 0 : index
    %6 = vector.load %arg4[%c0_6, %c0_7, %c0_8] : memref<1x1x32xf32, #tpu.memory_space<vmem>>, vector<1x1x32xf32>
    %7 = vector.shape_cast %6 : vector<1x1x32xf32> to vector<1x32xf32>
    %cst = arith.constant dense<0.000000e+00> : vector<1x8xf32>
    %8 = vector.multi_reduction <add>, %3, %cst [2] : vector<1x8x32xf32> to vector<1x8xf32>
    %9 = vector.shape_cast %8 : vector<1x8xf32> to vector<1x8x1xf32>
    %cst_9 = arith.constant 3.200000e+01 : f32
    %10 = vector.broadcast %cst_9 : f32 to vector<1x8x1xf32>
    %11 = arith.divf %9, %10 : vector<1x8x1xf32>
    %12 = vector.broadcast %11 : vector<1x8x1xf32> to vector<1x8x32xf32>
    %13 = arith.subf %3, %12 : vector<1x8x32xf32>
    %14 = arith.mulf %13, %13 : vector<1x8x32xf32>
    %cst_10 = arith.constant dense<0.000000e+00> : vector<1x8xf32>
    %15 = vector.multi_reduction <add>, %14, %cst_10 [2] : vector<1x8x32xf32> to vector<1x8xf32>
    %16 = vector.shape_cast %15 : vector<1x8xf32> to vector<1x8x1xf32>
    %cst_11 = arith.constant 3.200000e+01 : f32
    %17 = vector.broadcast %cst_11 : f32 to vector<1x8x1xf32>
    %18 = arith.divf %16, %17 : vector<1x8x1xf32>
    %19 = vector.broadcast %11 : vector<1x8x1xf32> to vector<1x8x32xf32>
    %20 = arith.subf %3, %19 : vector<1x8x32xf32>
    %cst_12 = arith.constant 9.99999974E-6 : f32
    %21 = vector.broadcast %cst_12 : f32 to vector<1x8x1xf32>
    %22 = arith.addf %18, %21 : vector<1x8x1xf32>
    %23 = math.rsqrt %22 : vector<1x8x1xf32>
    %24 = vector.broadcast %23 : vector<1x8x1xf32> to vector<1x8x32xf32>
    %25 = arith.mulf %20, %24 : vector<1x8x32xf32>
    %26 = vector.shape_cast %5 : vector<1x32xf32> to vector<1x1x32xf32>
    %27 = vector.broadcast %26 : vector<1x1x32xf32> to vector<1x8x32xf32>
    %28 = arith.mulf %25, %27 : vector<1x8x32xf32>
    %29 = vector.shape_cast %7 : vector<1x32xf32> to vector<1x1x32xf32>
    %30 = vector.broadcast %29 : vector<1x1x32xf32> to vector<1x8x32xf32>
    %31 = arith.addf %28, %30 : vector<1x8x32xf32>
    %32 = vector.shape_cast %31 : vector<1x8x32xf32> to vector<8x32xf32>
    %33 = arith.truncf %32 : vector<8x32xf32> to vector<8x32xbf16>
    %c0_13 = arith.constant 0 : index
    %c0_14 = arith.constant 0 : index
    %c0_15 = arith.constant 0 : index
    %34 = vector.load %arg5[%c0_13, %c0_14, %c0_15] : memref<1x32x96xbf16, #tpu.memory_space<vmem>>, vector<1x32x96xbf16>
    %35 = vector.shape_cast %34 : vector<1x32x96xbf16> to vector<32x96xbf16>
    %cst_16 = arith.constant dense<0.000000e+00> : vector<8x96xf32>
    %36 = tpu.matmul %33, %35, %cst_16 {dimension_numbers = #tpu.dot_dimension_numbers<[1], [0], [0], [1], [0, 0, 1, 1], [], []>} : vector<8x32xbf16>, vector<32x96xbf16>, vector<8x96xf32> -> vector<8x96xf32>
    %37 = vector.extract_strided_slice %36 {offsets = [0, 0], sizes = [8, 8], strides = [1, 1]} : vector<8x96xf32> to vector<8x8xf32>
    %cst_17 = arith.constant 0.353553385 : f32
    %38 = vector.broadcast %cst_17 : f32 to vector<8x8xf32>
    %39 = arith.mulf %37, %38 : vector<8x8xf32>
    %40 = arith.truncf %39 : vector<8x8xf32> to vector<8x8xbf16>
    %41 = vector.extract_strided_slice %36 {offsets = [0, 8], sizes = [8, 8], strides = [1, 1]} : vector<8x96xf32> to vector<8x8xf32>
    %cst_18 = arith.constant 0.353553385 : f32
    %42 = vector.broadcast %cst_18 : f32 to vector<8x8xf32>
    %43 = arith.mulf %41, %42 : vector<8x8xf32>
    %44 = arith.truncf %43 : vector<8x8xf32> to vector<8x8xbf16>
    %45 = vector.extract_strided_slice %36 {offsets = [0, 16], sizes = [8, 8], strides = [1, 1]} : vector<8x96xf32> to vector<8x8xf32>
    %cst_19 = arith.constant 0.353553385 : f32
    %46 = vector.broadcast %cst_19 : f32 to vector<8x8xf32>
    %47 = arith.mulf %45, %46 : vector<8x8xf32>
    %48 = arith.truncf %47 : vector<8x8xf32> to vector<8x8xbf16>
    %49 = vector.extract_strided_slice %36 {offsets = [0, 24], sizes = [8, 8], strides = [1, 1]} : vector<8x96xf32> to vector<8x8xf32>
    %cst_20 = arith.constant 0.353553385 : f32
    %50 = vector.broadcast %cst_20 : f32 to vector<8x8xf32>
    %51 = arith.mulf %49, %50 : vector<8x8xf32>
    %52 = arith.truncf %51 : vector<8x8xf32> to vector<8x8xbf16>
    %53 = vector.shape_cast %40 : vector<8x8xbf16> to vector<1x8x8xbf16>
    %54 = vector.shape_cast %44 : vector<8x8xbf16> to vector<1x8x8xbf16>
    %55 = vector.shape_cast %48 : vector<8x8xbf16> to vector<1x8x8xbf16>
    %56 = vector.shape_cast %52 : vector<8x8xbf16> to vector<1x8x8xbf16>
    %57 = tpu.concatenate %53, %54, %55, %56 in 0 : vector<1x8x8xbf16>, vector<1x8x8xbf16>, vector<1x8x8xbf16>, vector<1x8x8xbf16> -> vector<4x8x8xbf16>
    %58 = vector.extract_strided_slice %36 {offsets = [0, 32], sizes = [8, 8], strides = [1, 1]} : vector<8x96xf32> to vector<8x8xf32>
    %59 = arith.truncf %58 : vector<8x8xf32> to vector<8x8xbf16>
    %60 = vector.extract_strided_slice %36 {offsets = [0, 40], sizes = [8, 8], strides = [1, 1]} : vector<8x96xf32> to vector<8x8xf32>
    %61 = arith.truncf %60 : vector<8x8xf32> to vector<8x8xbf16>
    %62 = vector.extract_strided_slice %36 {offsets = [0, 48], sizes = [8, 8], strides = [1, 1]} : vector<8x96xf32> to vector<8x8xf32>
    %63 = arith.truncf %62 : vector<8x8xf32> to vector<8x8xbf16>
    %64 = vector.extract_strided_slice %36 {offsets = [0, 56], sizes = [8, 8], strides = [1, 1]} : vector<8x96xf32> to vector<8x8xf32>
    %65 = arith.truncf %64 : vector<8x8xf32> to vector<8x8xbf16>
    %66 = vector.shape_cast %59 : vector<8x8xbf16> to vector<1x8x8xbf16>
    %67 = vector.shape_cast %61 : vector<8x8xbf16> to vector<1x8x8xbf16>
    %68 = vector.shape_cast %63 : vector<8x8xbf16> to vector<1x8x8xbf16>
    %69 = vector.shape_cast %65 : vector<8x8xbf16> to vector<1x8x8xbf16>
    %70 = tpu.concatenate %66, %67, %68, %69 in 0 : vector<1x8x8xbf16>, vector<1x8x8xbf16>, vector<1x8x8xbf16>, vector<1x8x8xbf16> -> vector<4x8x8xbf16>
    %71 = vector.extract_strided_slice %36 {offsets = [0, 64], sizes = [8, 8], strides = [1, 1]} : vector<8x96xf32> to vector<8x8xf32>
    %72 = arith.truncf %71 : vector<8x8xf32> to vector<8x8xbf16>
    %73 = vector.extract_strided_slice %36 {offsets = [0, 72], sizes = [8, 8], strides = [1, 1]} : vector<8x96xf32> to vector<8x8xf32>
    %74 = arith.truncf %73 : vector<8x8xf32> to vector<8x8xbf16>
    %75 = vector.extract_strided_slice %36 {offsets = [0, 80], sizes = [8, 8], strides = [1, 1]} : vector<8x96xf32> to vector<8x8xf32>
    %76 = arith.truncf %75 : vector<8x8xf32> to vector<8x8xbf16>
    %77 = vector.extract_strided_slice %36 {offsets = [0, 88], sizes = [8, 8], strides = [1, 1]} : vector<8x96xf32> to vector<8x8xf32>
    %78 = arith.truncf %77 : vector<8x8xf32> to vector<8x8xbf16>
    %79 = vector.shape_cast %72 : vector<8x8xbf16> to vector<1x8x8xbf16>
    %80 = vector.shape_cast %74 : vector<8x8xbf16> to vector<1x8x8xbf16>
    %81 = vector.shape_cast %76 : vector<8x8xbf16> to vector<1x8x8xbf16>
    %82 = vector.shape_cast %78 : vector<8x8xbf16> to vector<1x8x8xbf16>
    %83 = tpu.concatenate %79, %80, %81, %82 in 0 : vector<1x8x8xbf16>, vector<1x8x8xbf16>, vector<1x8x8xbf16>, vector<1x8x8xbf16> -> vector<4x8x8xbf16>
    "tpu.trace_start"() <{level = 10 : i32, message = "gid,gjd->gij"}> : () -> ()
    %cst_21 = arith.constant dense<0.000000e+00> : vector<4x8x8xf32>
    %84 = tpu.matmul %57, %70, %cst_21 {dimension_numbers = #tpu.dot_dimension_numbers<[2], [2], [1], [1], [0, 0, 0, 1, 1, 1], [0], [0]>} : vector<4x8x8xbf16>, vector<4x8x8xbf16>, vector<4x8x8xf32> -> vector<4x8x8xf32>
    "tpu.trace_stop"() : () -> ()
    %cst_22 = arith.constant dense<0xFF800000> : vector<4x8xf32>
    %85 = vector.multi_reduction <maximumf>, %84, %cst_22 [2] : vector<4x8x8xf32> to vector<4x8xf32>
    %86 = vector.shape_cast %85 : vector<4x8xf32> to vector<4x8x1xf32>
    %87 = vector.broadcast %86 : vector<4x8x1xf32> to vector<4x8x8xf32>
    %88 = arith.subf %84, %87 : vector<4x8x8xf32>
    %89 = math.exp %88 : vector<4x8x8xf32>
    %cst_23 = arith.constant dense<0.000000e+00> : vector<4x8xf32>
    %90 = vector.multi_reduction <add>, %89, %cst_23 [2] : vector<4x8x8xf32> to vector<4x8xf32>
    %91 = vector.shape_cast %90 : vector<4x8xf32> to vector<4x8x1xf32>
    %92 = tpu.reciprocal %91 {approx = true} : vector<4x8x1xf32> -> vector<4x8x1xf32>
    %93 = vector.broadcast %92 : vector<4x8x1xf32> to vector<4x8x8xf32>
    %94 = arith.mulf %89, %93 : vector<4x8x8xf32>
    %95 = arith.truncf %94 : vector<4x8x8xf32> to vector<4x8x8xbf16>
    "tpu.trace_start"() <{level = 10 : i32, message = "gij,gjd->gid"}> : () -> ()
    %cst_24 = arith.constant dense<0.000000e+00> : vector<4x8x8xf32>
    %96 = tpu.matmul %95, %83, %cst_24 {dimension_numbers = #tpu.dot_dimension_numbers<[2], [1], [1], [2], [0, 0, 0, 1, 1, 2], [0], [0]>} : vector<4x8x8xbf16>, vector<4x8x8xbf16>, vector<4x8x8xf32> -> vector<4x8x8xf32>
    "tpu.trace_stop"() : () -> ()
    %97 = vector.shape_cast %96 : vector<4x8x8xf32> to vector<4x1x8x8xf32>
    %98 = vector.extract_strided_slice %97 {offsets = [0, 0, 0, 0], sizes = [1, 1, 8, 8], strides = [1, 1, 1, 1]} : vector<4x1x8x8xf32> to vector<1x1x8x8xf32>
    %99 = vector.shape_cast %98 : vector<1x1x8x8xf32> to vector<1x8x8xf32>
    %100 = vector.shape_cast %99 : vector<1x8x8xf32> to vector<8x8xf32>
    %101 = arith.truncf %100 : vector<8x8xf32> to vector<8x8xbf16>
    %102 = vector.extract_strided_slice %97 {offsets = [1, 0, 0, 0], sizes = [1, 1, 8, 8], strides = [1, 1, 1, 1]} : vector<4x1x8x8xf32> to vector<1x1x8x8xf32>
    %103 = vector.shape_cast %102 : vector<1x1x8x8xf32> to vector<1x8x8xf32>
    %104 = vector.shape_cast %103 : vector<1x8x8xf32> to vector<8x8xf32>
    %105 = arith.truncf %104 : vector<8x8xf32> to vector<8x8xbf16>
    %106 = vector.extract_strided_slice %97 {offsets = [2, 0, 0, 0], sizes = [1, 1, 8, 8], strides = [1, 1, 1, 1]} : vector<4x1x8x8xf32> to vector<1x1x8x8xf32>
    %107 = vector.shape_cast %106 : vector<1x1x8x8xf32> to vector<1x8x8xf32>
    %108 = vector.shape_cast %107 : vector<1x8x8xf32> to vector<8x8xf32>
    %109 = arith.truncf %108 : vector<8x8xf32> to vector<8x8xbf16>
    %110 = vector.extract_strided_slice %97 {offsets = [3, 0, 0, 0], sizes = [1, 1, 8, 8], strides = [1, 1, 1, 1]} : vector<4x1x8x8xf32> to vector<1x1x8x8xf32>
    %111 = vector.shape_cast %110 : vector<1x1x8x8xf32> to vector<1x8x8xf32>
    %112 = vector.shape_cast %111 : vector<1x8x8xf32> to vector<8x8xf32>
    %113 = arith.truncf %112 : vector<8x8xf32> to vector<8x8xbf16>
    %114 = tpu.concatenate %101, %105, %109, %113 in 1 : vector<8x8xbf16>, vector<8x8xbf16>, vector<8x8xbf16>, vector<8x8xbf16> -> vector<8x32xbf16>
    %c0_25 = arith.constant 0 : index
    %c0_26 = arith.constant 0 : index
    %c0_27 = arith.constant 0 : index
    %115 = vector.load %arg6[%c0_25, %c0_26, %c0_27] : memref<1x32x32xbf16, #tpu.memory_space<vmem>>, vector<1x32x32xbf16>
    %116 = vector.shape_cast %115 : vector<1x32x32xbf16> to vector<32x32xbf16>
    %cst_28 = arith.constant dense<0.000000e+00> : vector<8x32xf32>
    %117 = tpu.matmul %114, %116, %cst_28 {dimension_numbers = #tpu.dot_dimension_numbers<[1], [0], [0], [1], [0, 0, 1, 1], [], []>} : vector<8x32xbf16>, vector<32x32xbf16>, vector<8x32xf32> -> vector<8x32xf32>
    %c0_29 = arith.constant 0 : index
    %c0_30 = arith.constant 0 : index
    %c0_31 = arith.constant 0 : index
    %118 = vector.load %arg7[%c0_29, %c0_30, %c0_31] : memref<1x1x32xf32, #tpu.memory_space<vmem>>, vector<1x1x32xf32>
    %119 = vector.shape_cast %118 : vector<1x1x32xf32> to vector<1x32xf32>
    %120 = vector.broadcast %119 : vector<1x32xf32> to vector<8x32xf32>
    %121 = arith.addf %117, %120 : vector<8x32xf32>
    %122 = vector.shape_cast %121 : vector<8x32xf32> to vector<1x8x32xf32>
    %123 = arith.addf %3, %122 : vector<1x8x32xf32>
    %c0_32 = arith.constant 0 : index
    %c0_33 = arith.constant 0 : index
    %c0_34 = arith.constant 0 : index
    %124 = vector.load %arg8[%c0_32, %c0_33, %c0_34] : memref<1x1x32xf32, #tpu.memory_space<vmem>>, vector<1x1x32xf32>
    %125 = vector.shape_cast %124 : vector<1x1x32xf32> to vector<1x32xf32>
    %c0_35 = arith.constant 0 : index
    %c0_36 = arith.constant 0 : index
    %c0_37 = arith.constant 0 : index
    %126 = vector.load %arg9[%c0_35, %c0_36, %c0_37] : memref<1x1x32xf32, #tpu.memory_space<vmem>>, vector<1x1x32xf32>
    %127 = vector.shape_cast %126 : vector<1x1x32xf32> to vector<1x32xf32>
    %cst_38 = arith.constant dense<0.000000e+00> : vector<1x8xf32>
    %128 = vector.multi_reduction <add>, %123, %cst_38 [2] : vector<1x8x32xf32> to vector<1x8xf32>
    %129 = vector.shape_cast %128 : vector<1x8xf32> to vector<1x8x1xf32>
    %cst_39 = arith.constant 3.200000e+01 : f32
    %130 = vector.broadcast %cst_39 : f32 to vector<1x8x1xf32>
    %131 = arith.divf %129, %130 : vector<1x8x1xf32>
    %132 = vector.broadcast %131 : vector<1x8x1xf32> to vector<1x8x32xf32>
    %133 = arith.subf %123, %132 : vector<1x8x32xf32>
    %134 = arith.mulf %133, %133 : vector<1x8x32xf32>
    %cst_40 = arith.constant dense<0.000000e+00> : vector<1x8xf32>
    %135 = vector.multi_reduction <add>, %134, %cst_40 [2] : vector<1x8x32xf32> to vector<1x8xf32>
    %136 = vector.shape_cast %135 : vector<1x8xf32> to vector<1x8x1xf32>
    %cst_41 = arith.constant 3.200000e+01 : f32
    %137 = vector.broadcast %cst_41 : f32 to vector<1x8x1xf32>
    %138 = arith.divf %136, %137 : vector<1x8x1xf32>
    %139 = vector.broadcast %131 : vector<1x8x1xf32> to vector<1x8x32xf32>
    %140 = arith.subf %123, %139 : vector<1x8x32xf32>
    %cst_42 = arith.constant 9.99999974E-6 : f32
    %141 = vector.broadcast %cst_42 : f32 to vector<1x8x1xf32>
    %142 = arith.addf %138, %141 : vector<1x8x1xf32>
    %143 = math.rsqrt %142 : vector<1x8x1xf32>
    %144 = vector.broadcast %143 : vector<1x8x1xf32> to vector<1x8x32xf32>
    %145 = arith.mulf %140, %144 : vector<1x8x32xf32>
    %146 = vector.shape_cast %125 : vector<1x32xf32> to vector<1x1x32xf32>
    %147 = vector.broadcast %146 : vector<1x1x32xf32> to vector<1x8x32xf32>
    %148 = arith.mulf %145, %147 : vector<1x8x32xf32>
    %149 = vector.shape_cast %127 : vector<1x32xf32> to vector<1x1x32xf32>
    %150 = vector.broadcast %149 : vector<1x1x32xf32> to vector<1x8x32xf32>
    %151 = arith.addf %148, %150 : vector<1x8x32xf32>
    %152 = vector.shape_cast %151 : vector<1x8x32xf32> to vector<8x32xf32>
    %153 = arith.truncf %152 : vector<8x32xf32> to vector<8x32xbf16>
    %c0_43 = arith.constant 0 : index
    %c0_44 = arith.constant 0 : index
    %c0_45 = arith.constant 0 : index
    %154 = vector.load %arg10[%c0_43, %c0_44, %c0_45] : memref<1x32x64xbf16, #tpu.memory_space<vmem>>, vector<1x32x64xbf16>
    %155 = vector.shape_cast %154 : vector<1x32x64xbf16> to vector<32x64xbf16>
    %cst_46 = arith.constant dense<0.000000e+00> : vector<8x64xf32>
    %156 = tpu.matmul %153, %155, %cst_46 {dimension_numbers = #tpu.dot_dimension_numbers<[1], [0], [0], [1], [0, 0, 1, 1], [], []>} : vector<8x32xbf16>, vector<32x64xbf16>, vector<8x64xf32> -> vector<8x64xf32>
    %c0_47 = arith.constant 0 : index
    %c0_48 = arith.constant 0 : index
    %c0_49 = arith.constant 0 : index
    %157 = vector.load %arg11[%c0_47, %c0_48, %c0_49] : memref<1x1x64xf32, #tpu.memory_space<vmem>>, vector<1x1x64xf32>
    %158 = vector.shape_cast %157 : vector<1x1x64xf32> to vector<1x64xf32>
    %159 = vector.broadcast %158 : vector<1x64xf32> to vector<8x64xf32>
    %160 = arith.addf %156, %159 : vector<8x64xf32>
    %cst_50 = arith.constant 5.000000e-01 : f32
    %161 = vector.broadcast %cst_50 : f32 to vector<8x64xf32>
    %162 = arith.mulf %161, %160 : vector<8x64xf32>
    %cst_51 = arith.constant 0.707106769 : f32
    %163 = vector.broadcast %cst_51 : f32 to vector<8x64xf32>
    %164 = arith.mulf %160, %163 : vector<8x64xf32>
    %165 = math.erf %164 : vector<8x64xf32>
    %cst_52 = arith.constant 1.000000e+00 : f32
    %166 = vector.broadcast %cst_52 : f32 to vector<8x64xf32>
    %167 = arith.addf %166, %165 : vector<8x64xf32>
    %168 = arith.mulf %162, %167 : vector<8x64xf32>
    %169 = arith.truncf %168 : vector<8x64xf32> to vector<8x64xbf16>
    %c0_53 = arith.constant 0 : index
    %c0_54 = arith.constant 0 : index
    %c0_55 = arith.constant 0 : index
    %170 = vector.load %arg12[%c0_53, %c0_54, %c0_55] : memref<1x64x32xbf16, #tpu.memory_space<vmem>>, vector<1x64x32xbf16>
    %171 = vector.shape_cast %170 : vector<1x64x32xbf16> to vector<64x32xbf16>
    %cst_56 = arith.constant dense<0.000000e+00> : vector<8x32xf32>
    %172 = tpu.matmul %169, %171, %cst_56 {dimension_numbers = #tpu.dot_dimension_numbers<[1], [0], [0], [1], [0, 0, 1, 1], [], []>} : vector<8x64xbf16>, vector<64x32xbf16>, vector<8x32xf32> -> vector<8x32xf32>
    %c0_57 = arith.constant 0 : index
    %c0_58 = arith.constant 0 : index
    %c0_59 = arith.constant 0 : index
    %173 = vector.load %arg13[%c0_57, %c0_58, %c0_59] : memref<1x1x32xf32, #tpu.memory_space<vmem>>, vector<1x1x32xf32>
    %174 = vector.shape_cast %173 : vector<1x1x32xf32> to vector<1x32xf32>
    %175 = vector.broadcast %174 : vector<1x32xf32> to vector<8x32xf32>
    %176 = arith.addf %172, %175 : vector<8x32xf32>
    %177 = vector.shape_cast %176 : vector<8x32xf32> to vector<1x8x32xf32>
    %178 = arith.addf %123, %177 : vector<1x8x32xf32>
    %c0_60 = arith.constant 0 : index
    %c0_61 = arith.constant 0 : index
    %c0_62 = arith.constant 0 : index
    %179 = vector.load %arg14[%c0_60, %c0_61, %c0_62] : memref<1x8x32xf32, #tpu.memory_space<vmem>>, vector<1x8x32xf32>
    tpu.vector_store %arg14[%c0_60, %c0_61, %c0_62], %178 {strides = array<i32>} : memref<1x8x32xf32, #tpu.memory_space<vmem>>, vector<1x8x32xf32>,
    return
  }
  func.func @transform_0(%arg0: i32, %arg1: i32) -> (i32, i32, i32) {
    %c0_i32 = arith.constant 0 : i32
    %c0_i32_0 = arith.constant 0 : i32
    %c0_i32_1 = arith.constant 0 : i32
    return %arg0, %c0_i32, %c0_i32_0 : i32, i32, i32
  }
  func.func @transform_1(%arg0: i32, %arg1: i32) -> (i32, i32, i32) {
    %c0_i32 = arith.constant 0 : i32
    %c0_i32_0 = arith.constant 0 : i32
    %c0_i32_1 = arith.constant 0 : i32
    return %arg1, %c0_i32, %c0_i32_0 : i32, i32, i32
  }
  func.func @transform_2(%arg0: i32, %arg1: i32) -> (i32, i32, i32) {
    %c0_i32 = arith.constant 0 : i32
    %c0_i32_0 = arith.constant 0 : i32
    %c0_i32_1 = arith.constant 0 : i32
    return %arg1, %c0_i32, %c0_i32_0 : i32, i32, i32
  }
  func.func @transform_3(%arg0: i32, %arg1: i32) -> (i32, i32, i32) {
    %c0_i32 = arith.constant 0 : i32
    %c0_i32_0 = arith.constant 0 : i32
    %c0_i32_1 = arith.constant 0 : i32
    return %arg1, %c0_i32, %c0_i32_0 : i32, i32, i32
  }
  func.func @transform_4(%arg0: i32, %arg1: i32) -> (i32, i32, i32) {
    %c0_i32 = arith.constant 0 : i32
    %c0_i32_0 = arith.constant 0 : i32
    %c0_i32_1 = arith.constant 0 : i32
    return %arg1, %c0_i32, %c0_i32_0 : i32, i32, i32
  }
  func.func @transform_5(%arg0: i32, %arg1: i32) -> (i32, i32, i32) {
    %c0_i32 = arith.constant 0 : i32
    %c0_i32_0 = arith.constant 0 : i32
    %c0_i32_1 = arith.constant 0 : i32
    return %arg1, %c0_i32, %c0_i32_0 : i32, i32, i32
  }
  func.func @transform_6(%arg0: i32, %arg1: i32) -> (i32, i32, i32) {
    %c0_i32 = arith.constant 0 : i32
    %c0_i32_0 = arith.constant 0 : i32
    %c0_i32_1 = arith.constant 0 : i32
    return %arg1, %c0_i32, %c0_i32_0 : i32, i32, i32
  }
  func.func @transform_7(%arg0: i32, %arg1: i32) -> (i32, i32, i32) {
    %c0_i32 = arith.constant 0 : i32
    %c0_i32_0 = arith.constant 0 : i32
    %c0_i32_1 = arith.constant 0 : i32
    return %arg1, %c0_i32, %c0_i32_0 : i32, i32, i32
  }
  func.func @transform_8(%arg0: i32, %arg1: i32) -> (i32, i32, i32) {
    %c0_i32 = arith.constant 0 : i32
    %c0_i32_0 = arith.constant 0 : i32
    %c0_i32_1 = arith.constant 0 : i32
    return %arg1, %c0_i32, %c0_i32_0 : i32, i32, i32
  }
  func.func @transform_9(%arg0: i32, %arg1: i32) -> (i32, i32, i32) {
    %c0_i32 = arith.constant 0 : i32
    %c0_i32_0 = arith.constant 0 : i32
    %c0_i32_1 = arith.constant 0 : i32
    return %arg1, %c0_i32, %c0_i32_0 : i32, i32, i32
  }
  func.func @transform_10(%arg0: i32, %arg1: i32) -> (i32, i32, i32) {
    %c0_i32 = arith.constant 0 : i32
    %c0_i32_0 = arith.constant 0 : i32
    %c0_i32_1 = arith.constant 0 : i32
    return %arg1, %c0_i32, %c0_i32_0 : i32, i32, i32
  }
  func.func @transform_11(%arg0: i32, %arg1: i32) -> (i32, i32, i32) {
    %c0_i32 = arith.constant 0 : i32
    %c0_i32_0 = arith.constant 0 : i32
    %c0_i32_1 = arith.constant 0 : i32
    return %arg1, %c0_i32, %c0_i32_0 : i32, i32, i32
  }
  func.func @transform_12(%arg0: i32, %arg1: i32) -> (i32, i32, i32) {
    %c0_i32 = arith.constant 0 : i32
    %c0_i32_0 = arith.constant 0 : i32
    %c0_i32_1 = arith.constant 0 : i32
    return %arg0, %c0_i32, %c0_i32_0 : i32, i32, i32
  }
}

</mosaic_0001>

<llo_original>
// kernel: tpu_custom_call.1
$region0: #{tpu_custom_call.1}
  #allocation0 [shape = 'u32[]', space=smem, size = 0x4, offset = 0x4, fixed_abs, tag = 'smem constant byte address 0x4 - core index']
  #allocation1 [shape = 'u32[144,128]{1,0:T(1,128)}', space=vmem, size = 0x12000, scoped, tag = 'internal scratch']
  %s0 = inlined_call_operand.hbm [shape: f32[2,8,32], index: 0, kind: input, shape index: {}]
  %s1 = inlined_call_operand.hbm [shape: f32[2,1,32], index: 1, kind: input, shape index: {}]
  %s2 = inlined_call_operand.hbm [shape: f32[2,1,32], index: 2, kind: input, shape index: {}]
  %s3 = inlined_call_operand.hbm [shape: bf16[2,32,96], index: 3, kind: input, shape index: {}]
  %s4 = inlined_call_operand.hbm [shape: bf16[2,32,32], index: 4, kind: input, shape index: {}]
  %s5 = inlined_call_operand.hbm [shape: f32[2,1,32], index: 5, kind: input, shape index: {}]
  %s6 = inlined_call_operand.hbm [shape: f32[2,1,32], index: 6, kind: input, shape index: {}]
  %s7 = inlined_call_operand.hbm [shape: f32[2,1,32], index: 7, kind: input, shape index: {}]
  %s8 = inlined_call_operand.hbm [shape: bf16[2,32,64], index: 8, kind: input, shape index: {}]
  %s9 = inlined_call_operand.hbm [shape: f32[2,1,64], index: 9, kind: input, shape index: {}]
  %s10 = inlined_call_operand.hbm [shape: bf16[2,64,32], index: 10, kind: input, shape index: {}]
  %s11 = inlined_call_operand.hbm [shape: f32[2,1,32], index: 11, kind: input, shape index: {}]
  %s12 = inlined_call_operand.hbm [shape: f32[2,8,32], index: 12, kind: output, shape index: {}]
  %s13 = sld [smem:[#allocation0]]
  $region133: #{tpu_custom_call.1} parent=0
    _
  %s15 = ssub.s32 1, %s13
  %s16 = scalar_select 0, %s15, %s13
  $region1: #{tpu_custom_call.1} parent=0
    #allocation2 [shape = 'u8[8192]{0}', space=vmem, size = 0x2000, scoped, tag = 'input window, operand 0']
    #allocation3 [shape = 's32[2]{0}', space=sflag, size = 0x8, scoped, tag = 'scoped memory for tpu_custom_call.1']
    #allocation4 [shape = 's32[2]{0}', space=sflag, size = 0x8, scoped, tag = 'scoped memory for tpu_custom_call.1']
    #allocation5 [shape = 'u8[1024]{0}', space=vmem, size = 0x400, scoped, tag = 'input window, operand 1']
    #allocation6 [shape = 's32[2]{0}', space=sflag, size = 0x8, scoped, tag = 'scoped memory for tpu_custom_call.1']
    #allocation7 [shape = 'u8[1024]{0}', space=vmem, size = 0x400, scoped, tag = 'input window, operand 2']
    #allocation8 [shape = 'u8[16384]{0}', space=vmem, size = 0x4000, scoped, tag = 'input window, operand 3']
    #allocation9 [shape = 's32[2]{0}', space=sflag, size = 0x8, scoped, tag = 'scoped memory for tpu_custom_call.1']
    #allocation10 [shape = 'u8[16384]{0}', space=vmem, size = 0x4000, scoped, tag = 'input window, operand 4']
    #allocation11 [shape = 'u8[1024]{0}', space=vmem, size = 0x400, scoped, tag = 'input window, operand 5']
    #allocation12 [shape = 's32[2]{0}', space=sflag, size = 0x8, scoped, tag = 'scoped memory for tpu_custom_call.1']
    #allocation13 [shape = 'u8[1024]{0}', space=vmem, size = 0x400, scoped, tag = 'input window, operand 6']
    #allocation14 [shape = 'u8[1024]{0}', space=vmem, size = 0x400, scoped, tag = 'input window, operand 7']
    #allocation15 [shape = 's32[2]{0}', space=sflag, size = 0x8, scoped, tag = 'scoped memory for tpu_custom_call.1']
    #allocation16 [shape = 'u8[16384]{0}', space=vmem, size = 0x4000, scoped, tag = 'input window, operand 8']
    #allocation17 [shape = 'u8[1024]{0}', space=vmem, size = 0x400, scoped, tag = 'input window, operand 9']
    #allocation18 [shape = 's32[2]{0}', space=sflag, size = 0x8, scoped, tag = 'scoped memory for tpu_custom_call.1']
    #allocation19 [shape = 'u8[32768]{0}', space=vmem, size = 0x8000, scoped, tag = 'input window, operand 10']
    #allocation20 [shape = 'u8[1024]{0}', space=vmem, size = 0x400, scoped, tag = 'input window, operand 11']
    #allocation21 [shape = 's32[2]{0}', space=sflag, size = 0x8, scoped, tag = 'scoped memory for tpu_custom_call.1']
    #allocation22 [shape = 'u8[8192]{0}', space=vmem, size = 0x2000, scoped, tag = 'output window, operand 0']
    %17 = vsyncpa [#allocation3], 0
    %s18 = scalar_lea.sflag [#allocation3], 1
    %19 = vsyncpa %s18, 0
    %20 = vsyncpa [#allocation6], 0
    %s21 = scalar_lea.sflag [#allocation6], 1
    %22 = vsyncpa %s21, 0
    %23 = vsyncpa [#allocation9], 0
    %s24 = scalar_lea.sflag [#allocation9], 1
    %25 = vsyncpa %s24, 0
    %26 = vsyncpa [#allocation12], 0
    %s27 = scalar_lea.sflag [#allocation12], 1
    %28 = vsyncpa %s27, 0
    %29 = vsyncpa [#allocation15], 0
    %s30 = scalar_lea.sflag [#allocation15], 1
    %31 = vsyncpa %s30, 0
    %32 = vsyncpa [#allocation18], 0
    %s33 = scalar_lea.sflag [#allocation18], 1
    %34 = vsyncpa %s33, 0
    %35 = vsyncpa [#allocation21], 0
    %s36 = scalar_lea.sflag [#allocation21], 1
    %37 = vsyncpa %s36, 0
    %38 = vsyncpa [#allocation4], 0
    %s39 = scalar_lea.sflag [#allocation4], 1
    %40 = vsyncpa %s39, 0
    loop: start=0, step=1, limit=6
    $region2: #{tpu_custom_call.1} parent=1 // loop_pre_header
      _
    $region3: #{tpu_custom_call.1} parent=1 // loop_header
      %s42 = sphi 0, %s46
      %p43 = scmp.ge.s32.totalorder %s42, 6
      %s49 = sphi 0, %s61
      %s50 = sphi 0, %s57
      %s51 = sphi 0, %s49
      %s52 = sphi 0, %s50
      %s53 = sphi 0, %s51
      %s54 = sphi 0, %s52
      %s64 = sphi 0, %s66
      %s67 = sphi 0, %s64
      %s68 = sphi 0, %s67
      %s84 = sphi 0, %s68
      %s90 = sphi 0, %s92
      %s93 = sphi 0, %s90
      %s94 = sphi 0, %s93
      %s110 = sphi 0, %s94
      %s116 = sphi 0, %s118
      %s119 = sphi 0, %s116
      %s120 = sphi 0, %s119
      %s136 = sphi 0, %s120
      %s142 = sphi 0, %s144
      %s145 = sphi 0, %s142
      %s146 = sphi 0, %s145
      %s162 = sphi 0, %s146
      %s168 = sphi 0, %s170
      %s171 = sphi 0, %s168
      %s172 = sphi 0, %s171
      %s188 = sphi 0, %s172
      %s194 = sphi 0, %s196
      %s197 = sphi 0, %s194
      %s198 = sphi 0, %s197
      %s214 = sphi 0, %s198
      %s220 = sphi 0, %s222
      %s223 = sphi 0, %s220
      %s224 = sphi 0, %s223
      %s240 = sphi 0, %s224
      %s246 = sphi 0, %s248
      %s249 = sphi 0, %s246
      %s250 = sphi 0, %s249
      %s266 = sphi 0, %s250
      %s272 = sphi 0, %s274
      %s275 = sphi 0, %s272
      %s276 = sphi 0, %s275
      %s292 = sphi 0, %s276
      %s298 = sphi 0, %s300
      %s301 = sphi 0, %s298
      %s302 = sphi 0, %s301
      %s318 = sphi 0, %s302
      %s324 = sphi 0, %s326
      %s327 = sphi 0, %s324
      %s328 = sphi 0, %s327
      %s344 = sphi 0, %s328
      %s350 = sphi 0, %s352
      %s353 = sphi 0, %s350
      %s354 = sphi 0, %s353
      %s370 = sphi 0, %s354
      %s376 = sphi 0, %s378
      %s379 = sphi 0, %s376
      %s380 = sphi 0, %s379
      %s396 = sphi 0, %s380
    $region4: #{tpu_custom_call.1} parent=1 // loop_header_branch
      %45 = sbr.rel (%p43) target = $region8
    $region5: #{tpu_custom_call.1} parent=1 // loop_body
      %s47 = ssub.s32 %s42, 1
      %s48 = ssub.s32 %s42, 2
      %s55 = sadd.s32 1, %s50
      %p56 = scmp.ge.s32.totalorder %s55, 2
      %s57 = scalar_select %p56, 0, %s55
      %s58 = sadd.s32 1, %s49
      %s59 = scalar_select %p56, %s58, %s49
      %p60 = scmp.ge.s32.totalorder %s59, 2
      %s61 = scalar_select %p60, 0, %s59
      %s62 = ssub.s32 %s49, %s61
      %p63 = scmp.eq.s32.totalorder %s62, 0
      %s65 = sadd.s32 %s64, 1
      %s66 = scalar_select %p63, %s64, %s65
      %p69 = pneg %p63
      %p70 = scmp.eq.s32.totalorder %s42, 3
      %p71 = por %p69, %p70
      %p72 = scmp.ne.s32.totalorder %s64, %s67
      %p73 = scmp.eq.s32.totalorder %s42, 0
      %p74 = por %p72, %p73
      %p75 = scmp.ne.s32.totalorder %s64, %s67
      %p76 = scmp.eq.s32.totalorder %s47, 3
      %p77 = por %p75, %p76
      %p78 = scmp.ne.s32.totalorder %s67, %s68
      %p79 = scmp.eq.s32.totalorder %s47, 0
      %p80 = por %p78, %p79
      %p81 = scmp.ne.s32.totalorder %s67, %s68
      %p82 = scmp.eq.s32.totalorder %s48, 3
      %p83 = por %p81, %p82
      %p85 = scmp.ne.s32.totalorder %s68, %s84
      %p86 = scmp.eq.s32.totalorder %s48, 0
      %p87 = por %p85, %p86
      %s88 = ssub.s32 %s50, %s57
      %p89 = scmp.eq.s32.totalorder %s88, 0
      %s91 = sadd.s32 %s90, 1
      %s92 = scalar_select %p89, %s90, %s91
      %p95 = pneg %p89
      %p96 = scmp.eq.s32.totalorder %s42, 3
      %p97 = por %p95, %p96
      %p98 = scmp.ne.s32.totalorder %s90, %s93
      %p99 = scmp.eq.s32.totalorder %s42, 0
      %p100 = por %p98, %p99
      %p101 = scmp.ne.s32.totalorder %s90, %s93
      %p102 = scmp.eq.s32.totalorder %s47, 3
      %p103 = por %p101, %p102
      %p104 = scmp.ne.s32.totalorder %s93, %s94
      %p105 = scmp.eq.s32.totalorder %s47, 0
      %p106 = por %p104, %p105
      %p107 = scmp.ne.s32.totalorder %s93, %s94
      %p108 = scmp.eq.s32.totalorder %s48, 3
      %p109 = por %p107, %p108
      %p111 = scmp.ne.s32.totalorder %s94, %s110
      %p112 = scmp.eq.s32.totalorder %s48, 0
      %p113 = por %p111, %p112
      %s114 = ssub.s32 %s50, %s57
      %p115 = scmp.eq.s32.totalorder %s114, 0
      %s117 = sadd.s32 %s116, 1
      %s118 = scalar_select %p115, %s116, %s117
      %p121 = pneg %p115
      %p122 = scmp.eq.s32.totalorder %s42, 3
      %p123 = por %p121, %p122
      %p124 = scmp.ne.s32.totalorder %s116, %s119
      %p125 = scmp.eq.s32.totalorder %s42, 0
      %p126 = por %p124, %p125
      %p127 = scmp.ne.s32.totalorder %s116, %s119
      %p128 = scmp.eq.s32.totalorder %s47, 3
      %p129 = por %p127, %p128
      %p130 = scmp.ne.s32.totalorder %s119, %s120
      %p131 = scmp.eq.s32.totalorder %s47, 0
      %p132 = por %p130, %p131
      %p133 = scmp.ne.s32.totalorder %s119, %s120
      %p134 = scmp.eq.s32.totalorder %s48, 3
      %p135 = por %p133, %p134
      %p137 = scmp.ne.s32.totalorder %s120, %s136
      %p138 = scmp.eq.s32.totalorder %s48, 0
      %p139 = por %p137, %p138
      %s140 = ssub.s32 %s50, %s57
      %p141 = scmp.eq.s32.totalorder %s140, 0
      %s143 = sadd.s32 %s142, 1
      %s144 = scalar_select %p141, %s142, %s143
      %p147 = pneg %p141
      %p148 = scmp.eq.s32.totalorder %s42, 3
      %p149 = por %p147, %p148
      %p150 = scmp.ne.s32.totalorder %s142, %s145
      %p151 = scmp.eq.s32.totalorder %s42, 0
      %p152 = por %p150, %p151
      %p153 = scmp.ne.s32.totalorder %s142, %s145
      %p154 = scmp.eq.s32.totalorder %s47, 3
      %p155 = por %p153, %p154
      %p156 = scmp.ne.s32.totalorder %s145, %s146
      %p157 = scmp.eq.s32.totalorder %s47, 0
      %p158 = por %p156, %p157
      %p159 = scmp.ne.s32.totalorder %s145, %s146
      %p160 = scmp.eq.s32.totalorder %s48, 3
      %p161 = por %p159, %p160
      %p163 = scmp.ne.s32.totalorder %s146, %s162
      %p164 = scmp.eq.s32.totalorder %s48, 0
      %p165 = por %p163, %p164
      %s166 = ssub.s32 %s50, %s57
      %p167 = scmp.eq.s32.totalorder %s166, 0
      %s169 = sadd.s32 %s168, 1
      %s170 = scalar_select %p167, %s168, %s169
      %p173 = pneg %p167
      %p174 = scmp.eq.s32.totalorder %s42, 3
      %p175 = por %p173, %p174
      %p176 = scmp.ne.s32.totalorder %s168, %s171
      %p177 = scmp.eq.s32.totalorder %s42, 0
      %p178 = por %p176, %p177
      %p179 = scmp.ne.s32.totalorder %s168, %s171
      %p180 = scmp.eq.s32.totalorder %s47, 3
      %p181 = por %p179, %p180
      %p182 = scmp.ne.s32.totalorder %s171, %s172
      %p183 = scmp.eq.s32.totalorder %s47, 0
      %p184 = por %p182, %p183
      %p185 = scmp.ne.s32.totalorder %s171, %s172
      %p186 = scmp.eq.s32.totalorder %s48, 3
      %p187 = por %p185, %p186
      %p189 = scmp.ne.s32.totalorder %s172, %s188
      %p190 = scmp.eq.s32.totalorder %s48, 0
      %p191 = por %p189, %p190
      %s192 = ssub.s32 %s50, %s57
      %p193 = scmp.eq.s32.totalorder %s192, 0
      %s195 = sadd.s32 %s194, 1
      %s196 = scalar_select %p193, %s194, %s195
      %p199 = pneg %p193
      %p200 = scmp.eq.s32.totalorder %s42, 3
      %p201 = por %p199, %p200
      %p202 = scmp.ne.s32.totalorder %s194, %s197
      %p203 = scmp.eq.s32.totalorder %s42, 0
      %p204 = por %p202, %p203
      %p205 = scmp.ne.s32.totalorder %s194, %s197
      %p206 = scmp.eq.s32.totalorder %s47, 3
      %p207 = por %p205, %p206
      %p208 = scmp.ne.s32.totalorder %s197, %s198
      %p209 = scmp.eq.s32.totalorder %s47, 0
      %p210 = por %p208, %p209
      %p211 = scmp.ne.s32.totalorder %s197, %s198
      %p212 = scmp.eq.s32.totalorder %s48, 3
      %p213 = por %p211, %p212
      %p215 = scmp.ne.s32.totalorder %s198, %s214
      %p216 = scmp.eq.s32.totalorder %s48, 0
      %p217 = por %p215, %p216
      %s218 = ssub.s32 %s50, %s57
      %p219 = scmp.eq.s32.totalorder %s218, 0
      %s221 = sadd.s32 %s220, 1
      %s222 = scalar_select %p219, %s220, %s221
      %p225 = pneg %p219
      %p226 = scmp.eq.s32.totalorder %s42, 3
      %p227 = por %p225, %p226
      %p228 = scmp.ne.s32.totalorder %s220, %s223
      %p229 = scmp.eq.s32.totalorder %s42, 0
      %p230 = por %p228, %p229
      %p231 = scmp.ne.s32.totalorder %s220, %s223
      %p232 = scmp.eq.s32.totalorder %s47, 3
      %p233 = por %p231, %p232
      %p234 = scmp.ne.s32.totalorder %s223, %s224
      %p235 = scmp.eq.s32.totalorder %s47, 0
      %p236 = por %p234, %p235
      %p237 = scmp.ne.s32.totalorder %s223, %s224
      %p238 = scmp.eq.s32.totalorder %s48, 3
      %p239 = por %p237, %p238
      %p241 = scmp.ne.s32.totalorder %s224, %s240
      %p242 = scmp.eq.s32.totalorder %s48, 0
      %p243 = por %p241, %p242
      %s244 = ssub.s32 %s50, %s57
      %p245 = scmp.eq.s32.totalorder %s244, 0
      %s247 = sadd.s32 %s246, 1
      %s248 = scalar_select %p245, %s246, %s247
      %p251 = pneg %p245
      %p252 = scmp.eq.s32.totalorder %s42, 3
      %p253 = por %p251, %p252
      %p254 = scmp.ne.s32.totalorder %s246, %s249
      %p255 = scmp.eq.s32.totalorder %s42, 0
      %p256 = por %p254, %p255
      %p257 = scmp.ne.s32.totalorder %s246, %s249
      %p258 = scmp.eq.s32.totalorder %s47, 3
      %p259 = por %p257, %p258
      %p260 = scmp.ne.s32.totalorder %s249, %s250
      %p261 = scmp.eq.s32.totalorder %s47, 0
      %p262 = por %p260, %p261
      %p263 = scmp.ne.s32.totalorder %s249, %s250
      %p264 = scmp.eq.s32.totalorder %s48, 3
      %p265 = por %p263, %p264
      %p267 = scmp.ne.s32.totalorder %s250, %s266
      %p268 = scmp.eq.s32.totalorder %s48, 0
      %p269 = por %p267, %p268
      %s270 = ssub.s32 %s50, %s57
      %p271 = scmp.eq.s32.totalorder %s270, 0
      %s273 = sadd.s32 %s272, 1
      %s274 = scalar_select %p271, %s272, %s273
      %p277 = pneg %p271
      %p278 = scmp.eq.s32.totalorder %s42, 3
      %p279 = por %p277, %p278
      %p280 = scmp.ne.s32.totalorder %s272, %s275
      %p281 = scmp.eq.s32.totalorder %s42, 0
      %p282 = por %p280, %p281
      %p283 = scmp.ne.s32.totalorder %s272, %s275
      %p284 = scmp.eq.s32.totalorder %s47, 3
      %p285 = por %p283, %p284
      %p286 = scmp.ne.s32.totalorder %s275, %s276
      %p287 = scmp.eq.s32.totalorder %s47, 0
      %p288 = por %p286, %p287
      %p289 = scmp.ne.s32.totalorder %s275, %s276
      %p290 = scmp.eq.s32.totalorder %s48, 3
      %p291 = por %p289, %p290
      %p293 = scmp.ne.s32.totalorder %s276, %s292
      %p294 = scmp.eq.s32.totalorder %s48, 0
      %p295 = por %p293, %p294
      %s296 = ssub.s32 %s50, %s57
      %p297 = scmp.eq.s32.totalorder %s296, 0
      %s299 = sadd.s32 %s298, 1
      %s300 = scalar_select %p297, %s298, %s299
      %p303 = pneg %p297
      %p304 = scmp.eq.s32.totalorder %s42, 3
      %p305 = por %p303, %p304
      %p306 = scmp.ne.s32.totalorder %s298, %s301
      %p307 = scmp.eq.s32.totalorder %s42, 0
      %p308 = por %p306, %p307
      %p309 = scmp.ne.s32.totalorder %s298, %s301
      %p310 = scmp.eq.s32.totalorder %s47, 3
      %p311 = por %p309, %p310
      %p312 = scmp.ne.s32.totalorder %s301, %s302
      %p313 = scmp.eq.s32.totalorder %s47, 0
      %p314 = por %p312, %p313
      %p315 = scmp.ne.s32.totalorder %s301, %s302
      %p316 = scmp.eq.s32.totalorder %s48, 3
      %p317 = por %p315, %p316
      %p319 = scmp.ne.s32.totalorder %s302, %s318
      %p320 = scmp.eq.s32.totalorder %s48, 0
      %p321 = por %p319, %p320
      %s322 = ssub.s32 %s50, %s57
      %p323 = scmp.eq.s32.totalorder %s322, 0
      %s325 = sadd.s32 %s324, 1
      %s326 = scalar_select %p323, %s324, %s325
      %p329 = pneg %p323
      %p330 = scmp.eq.s32.totalorder %s42, 3
      %p331 = por %p329, %p330
      %p332 = scmp.ne.s32.totalorder %s324, %s327
      %p333 = scmp.eq.s32.totalorder %s42, 0
      %p334 = por %p332, %p333
      %p335 = scmp.ne.s32.totalorder %s324, %s327
      %p336 = scmp.eq.s32.totalorder %s47, 3
      %p337 = por %p335, %p336
      %p338 = scmp.ne.s32.totalorder %s327, %s328
      %p339 = scmp.eq.s32.totalorder %s47, 0
      %p340 = por %p338, %p339
      %p341 = scmp.ne.s32.totalorder %s327, %s328
      %p342 = scmp.eq.s32.totalorder %s48, 3
      %p343 = por %p341, %p342
      %p345 = scmp.ne.s32.totalorder %s328, %s344
      %p346 = scmp.eq.s32.totalorder %s48, 0
      %p347 = por %p345, %p346
      %s348 = ssub.s32 %s50, %s57
      %p349 = scmp.eq.s32.totalorder %s348, 0
      %s351 = sadd.s32 %s350, 1
      %s352 = scalar_select %p349, %s350, %s351
      %p355 = pneg %p349
      %p356 = scmp.eq.s32.totalorder %s42, 3
      %p357 = por %p355, %p356
      %p358 = scmp.ne.s32.totalorder %s350, %s353
      %p359 = scmp.eq.s32.totalorder %s42, 0
      %p360 = por %p358, %p359
      %p361 = scmp.ne.s32.totalorder %s350, %s353
      %p362 = scmp.eq.s32.totalorder %s47, 3
      %p363 = por %p361, %p362
      %p364 = scmp.ne.s32.totalorder %s353, %s354
      %p365 = scmp.eq.s32.totalorder %s47, 0
      %p366 = por %p364, %p365
      %p367 = scmp.ne.s32.totalorder %s353, %s354
      %p368 = scmp.eq.s32.totalorder %s48, 3
      %p369 = por %p367, %p368
      %p371 = scmp.ne.s32.totalorder %s354, %s370
      %p372 = scmp.eq.s32.totalorder %s48, 0
      %p373 = por %p371, %p372
      %s374 = ssub.s32 %s49, %s61
      %p375 = scmp.eq.s32.totalorder %s374, 0
      %s377 = sadd.s32 %s376, 1
      %s378 = scalar_select %p375, %s376, %s377
      %p381 = pneg %p375
      %p382 = scmp.eq.s32.totalorder %s42, 3
      %p383 = por %p381, %p382
      %p384 = scmp.ne.s32.totalorder %s376, %s379
      %p385 = scmp.eq.s32.totalorder %s42, 0
      %p386 = por %p384, %p385
      %p387 = scmp.ne.s32.totalorder %s376, %s379
      %p388 = scmp.eq.s32.totalorder %s47, 3
      %p389 = por %p387, %p388
      %p390 = scmp.ne.s32.totalorder %s379, %s380
      %p391 = scmp.eq.s32.totalorder %s47, 0
      %p392 = por %p390, %p391
      %p393 = scmp.ne.s32.totalorder %s379, %s380
      %p394 = scmp.eq.s32.totalorder %s48, 3
      %p395 = por %p393, %p394
      %p397 = scmp.ne.s32.totalorder %s380, %s396
      %p398 = scmp.eq.s32.totalorder %s48, 0
      %p399 = por %p397, %p398
      %p400 = scmp.le.s32.totalorder 1, %s42
      %p401 = scmp.lt.s32.totalorder %s42, 5
      %p402 = pnand %p400, %p401
      %p403 = pneg %p402
      // Predicated region
      $region9: #{tpu_custom_call.1} parent=5 // pred_check
        _
      $region10: #{tpu_custom_call.1} parent=5 // pred_check_branch
        %405 = sbr.rel (%p402) target = $region12
      $region11: #{tpu_custom_call.1} parent=5 // pred_region
        %s406 = ssub.s32 %s42, 1
      $region12: #{tpu_custom_call.1} parent=5 // pred_fallthru
        _
      %p407 = scmp.lt.s32.totalorder %s42, 4
      // Predicated region
      $region13: #{tpu_custom_call.1} parent=5 // pred_check
        %p408 = pneg %p407
      $region14: #{tpu_custom_call.1} parent=5 // pred_check_branch
        %410 = sbr.rel (%p408) target = $region16
      $region15: #{tpu_custom_call.1} parent=5 // pred_region
        // Predicated region
        $region17: #{tpu_custom_call.1} parent=15 // pred_check
          %p411 = pneg %p74
        $region18: #{tpu_custom_call.1} parent=15 // pred_check_branch
          %413 = sbr.rel (%p411) target = $region20
        $region19: #{tpu_custom_call.1} parent=15 // pred_region
          %s414 = sand.u32 %s64, 1
          %s415 = scalar_lea.sflag [#allocation3], %s414
          %s416 = sand.u32 %s64, 1
          %s417 = smul.addr %s416, 8
          %s418 = scalar_lea.vmem [#allocation2], %s417
          %s420 = ssub.s32 128, 128
          %421 = vsyncadd %s415, %s420
          %s422 = smul.addr %s49, 128
          %s423 = scalar_lea.hbm %s0, %s422
          %s425 = sshll.u32 %s418, 4
          %s426 = int_to_ptr.vmem [resolvable:$true] %s425
          %428 = dma.hbm_to_vmem [thread:$0]  %s423, 128, %s426, %s415
        $region20: #{tpu_custom_call.1} parent=15 // pred_fallthru
          _
        // Predicated region
        $region21: #{tpu_custom_call.1} parent=15 // pred_check
          %p429 = pneg %p100
        $region22: #{tpu_custom_call.1} parent=15 // pred_check_branch
          %431 = sbr.rel (%p429) target = $region24
        $region23: #{tpu_custom_call.1} parent=15 // pred_region
          %s432 = sand.u32 %s42, 1
          %s433 = scalar_lea.sflag [#allocation6], %s432
          %s434 = sand.u32 %s90, 1
          %s435 = scalar_lea.vmem [#allocation5], %s434
          %s437 = ssub.s32 16, 16
          %438 = vsyncadd %s433, %s437
          %s439 = smul.addr %s50, 16
          %s440 = scalar_lea.hbm %s1, %s439
          %s442 = sshll.u32 %s435, 4
          %s443 = int_to_ptr.vmem [resolvable:$true] %s442
          %445 = dma.hbm_to_vmem [thread:$0]  %s440, 16, %s443, %s433
        $region24: #{tpu_custom_call.1} parent=15 // pred_fallthru
          _
        // Predicated region
        $region25: #{tpu_custom_call.1} parent=15 // pred_check
          %p446 = pneg %p126
        $region26: #{tpu_custom_call.1} parent=15 // pred_check_branch
          %448 = sbr.rel (%p446) target = $region28
        $region27: #{tpu_custom_call.1} parent=15 // pred_region
          %s449 = sand.u32 %s42, 1
          %s450 = scalar_lea.sflag [#allocation6], %s449
          %s451 = sand.u32 %s116, 1
          %s452 = scalar_lea.vmem [#allocation7], %s451
          %s454 = ssub.s32 16, 16
          %455 = vsyncadd %s450, %s454
          %s456 = smul.addr %s50, 16
          %s457 = scalar_lea.hbm %s2, %s456
          %s459 = sshll.u32 %s452, 4
          %s460 = int_to_ptr.vmem [resolvable:$true] %s459
          %462 = dma.hbm_to_vmem [thread:$0]  %s457, 16, %s460, %s450
        $region28: #{tpu_custom_call.1} parent=15 // pred_fallthru
          _
        // Predicated region
        $region29: #{tpu_custom_call.1} parent=15 // pred_check
          %p463 = pneg %p152
        $region30: #{tpu_custom_call.1} parent=15 // pred_check_branch
          %465 = sbr.rel (%p463) target = $region32
        $region31: #{tpu_custom_call.1} parent=15 // pred_region
          %s466 = sand.u32 %s42, 1
          %s467 = scalar_lea.sflag [#allocation9], %s466
          %s468 = sand.u32 %s142, 1
          %s469 = smul.addr %s468, 16
          %s470 = scalar_lea.vmem [#allocation8], %s469
          %s472 = ssub.s32 256, 256
          %473 = vsyncadd %s467, %s472
          %s474 = smul.addr %s50, 4
          %s475 = smul.addr %s474, 64
          %s476 = scalar_lea.hbm %s3, %s475
          %s477 = sshll.u32 %s470, 4
          %s478 = int_to_ptr.vmem [resolvable:$true] %s477
          %483 = dma.hbm_to_vmem [thread:$0]  %s476, 256, %s478, %s467, 64, 64, 4
        $region32: #{tpu_custom_call.1} parent=15 // pred_fallthru
          _
        // Predicated region
        $region33: #{tpu_custom_call.1} parent=15 // pred_check
          %p484 = pneg %p178
        $region34: #{tpu_custom_call.1} parent=15 // pred_check_branch
          %486 = sbr.rel (%p484) target = $region36
        $region35: #{tpu_custom_call.1} parent=15 // pred_region
          %s487 = sand.u32 %s42, 1
          %s488 = scalar_lea.sflag [#allocation9], %s487
          %s489 = sand.u32 %s168, 1
          %s490 = smul.addr %s489, 16
          %s491 = scalar_lea.vmem [#allocation10], %s490
          %s493 = ssub.s32 256, 256
          %494 = vsyncadd %s488, %s493
          %s495 = smul.addr %s50, 4
          %s496 = smul.addr %s495, 64
          %s497 = scalar_lea.hbm %s4, %s496
          %s498 = sshll.u32 %s491, 4
          %s499 = int_to_ptr.vmem [resolvable:$true] %s498
          %504 = dma.hbm_to_vmem [thread:$0]  %s497, 256, %s499, %s488, 64, 64, 4
        $region36: #{tpu_custom_call.1} parent=15 // pred_fallthru
          _
        // Predicated region
        $region37: #{tpu_custom_call.1} parent=15 // pred_check
          %p505 = pneg %p204
        $region38: #{tpu_custom_call.1} parent=15 // pred_check_branch
          %507 = sbr.rel (%p505) target = $region40
        $region39: #{tpu_custom_call.1} parent=15 // pred_region
          %s508 = sand.u32 %s42, 1
          %s509 = scalar_lea.sflag [#allocation12], %s508
          %s510 = sand.u32 %s194, 1
          %s511 = scalar_lea.vmem [#allocation11], %s510
          %s513 = ssub.s32 16, 16
          %514 = vsyncadd %s509, %s513
          %s515 = smul.addr %s50, 16
          %s516 = scalar_lea.hbm %s5, %s515
          %s518 = sshll.u32 %s511, 4
          %s519 = int_to_ptr.vmem [resolvable:$true] %s518
          %521 = dma.hbm_to_vmem [thread:$0]  %s516, 16, %s519, %s509
        $region40: #{tpu_custom_call.1} parent=15 // pred_fallthru
          _
        // Predicated region
        $region41: #{tpu_custom_call.1} parent=15 // pred_check
          %p522 = pneg %p230
        $region42: #{tpu_custom_call.1} parent=15 // pred_check_branch
          %524 = sbr.rel (%p522) target = $region44
        $region43: #{tpu_custom_call.1} parent=15 // pred_region
          %s525 = sand.u32 %s42, 1
          %s526 = scalar_lea.sflag [#allocation12], %s525
          %s527 = sand.u32 %s220, 1
          %s528 = scalar_lea.vmem [#allocation13], %s527
          %s530 = ssub.s32 16, 16
          %531 = vsyncadd %s526, %s530
          %s532 = smul.addr %s50, 16
          %s533 = scalar_lea.hbm %s6, %s532
          %s535 = sshll.u32 %s528, 4
          %s536 = int_to_ptr.vmem [resolvable:$true] %s535
          %538 = dma.hbm_to_vmem [thread:$0]  %s533, 16, %s536, %s526
        $region44: #{tpu_custom_call.1} parent=15 // pred_fallthru
          _
        // Predicated region
        $region45: #{tpu_custom_call.1} parent=15 // pred_check
          %p539 = pneg %p256
        $region46: #{tpu_custom_call.1} parent=15 // pred_check_branch
          %541 = sbr.rel (%p539) target = $region48
        $region47: #{tpu_custom_call.1} parent=15 // pred_region
          %s542 = sand.u32 %s42, 1
          %s543 = scalar_lea.sflag [#allocation15], %s542
          %s544 = sand.u32 %s246, 1
          %s545 = scalar_lea.vmem [#allocation14], %s544
          %s547 = ssub.s32 16, 16
          %548 = vsyncadd %s543, %s547
          %s549 = smul.addr %s50, 16
          %s550 = scalar_lea.hbm %s7, %s549
          %s552 = sshll.u32 %s545, 4
          %s553 = int_to_ptr.vmem [resolvable:$true] %s552
          %555 = dma.hbm_to_vmem [thread:$0]  %s550, 16, %s553, %s543
        $region48: #{tpu_custom_call.1} parent=15 // pred_fallthru
          _
        // Predicated region
        $region49: #{tpu_custom_call.1} parent=15 // pred_check
          %p556 = pneg %p282
        $region50: #{tpu_custom_call.1} parent=15 // pred_check_branch
          %558 = sbr.rel (%p556) target = $region52
        $region51: #{tpu_custom_call.1} parent=15 // pred_region
          %s559 = sand.u32 %s42, 1
          %s560 = scalar_lea.sflag [#allocation15], %s559
          %s561 = sand.u32 %s272, 1
          %s562 = smul.addr %s561, 16
          %s563 = scalar_lea.vmem [#allocation16], %s562
          %s565 = ssub.s32 256, 256
          %566 = vsyncadd %s560, %s565
          %s567 = smul.addr %s50, 4
          %s568 = smul.addr %s567, 64
          %s569 = scalar_lea.hbm %s8, %s568
          %s570 = sshll.u32 %s563, 4
          %s571 = int_to_ptr.vmem [resolvable:$true] %s570
          %576 = dma.hbm_to_vmem [thread:$0]  %s569, 256, %s571, %s560, 64, 64, 4
        $region52: #{tpu_custom_call.1} parent=15 // pred_fallthru
          _
        // Predicated region
        $region53: #{tpu_custom_call.1} parent=15 // pred_check
          %p577 = pneg %p308
        $region54: #{tpu_custom_call.1} parent=15 // pred_check_branch
          %579 = sbr.rel (%p577) target = $region56
        $region55: #{tpu_custom_call.1} parent=15 // pred_region
          %s580 = sand.u32 %s42, 1
          %s581 = scalar_lea.sflag [#allocation18], %s580
          %s582 = sand.u32 %s298, 1
          %s583 = scalar_lea.vmem [#allocation17], %s582
          %s585 = ssub.s32 16, 16
          %586 = vsyncadd %s581, %s585
          %s587 = smul.addr %s50, 16
          %s588 = scalar_lea.hbm %s9, %s587
          %s590 = sshll.u32 %s583, 4
          %s591 = int_to_ptr.vmem [resolvable:$true] %s590
          %593 = dma.hbm_to_vmem [thread:$0]  %s588, 16, %s591, %s581
        $region56: #{tpu_custom_call.1} parent=15 // pred_fallthru
          _
        // Predicated region
        $region57: #{tpu_custom_call.1} parent=15 // pred_check
          %p594 = pneg %p334
        $region58: #{tpu_custom_call.1} parent=15 // pred_check_branch
          %596 = sbr.rel (%p594) target = $region60
        $region59: #{tpu_custom_call.1} parent=15 // pred_region
          %s597 = sand.u32 %s42, 1
          %s598 = scalar_lea.sflag [#allocation18], %s597
          %s599 = sand.u32 %s324, 1
          %s600 = smul.addr %s599, 32
          %s601 = scalar_lea.vmem [#allocation19], %s600
          %s603 = ssub.s32 512, 512
          %604 = vsyncadd %s598, %s603
          %s605 = smul.addr %s50, 8
          %s606 = smul.addr %s605, 64
          %s607 = scalar_lea.hbm %s10, %s606
          %s608 = sshll.u32 %s601, 4
          %s609 = int_to_ptr.vmem [resolvable:$true] %s608
          %614 = dma.hbm_to_vmem [thread:$0]  %s607, 512, %s609, %s598, 64, 64, 4
        $region60: #{tpu_custom_call.1} parent=15 // pred_fallthru
          _
        // Predicated region
        $region61: #{tpu_custom_call.1} parent=15 // pred_check
          %p615 = pneg %p360
        $region62: #{tpu_custom_call.1} parent=15 // pred_check_branch
          %617 = sbr.rel (%p615) target = $region64
        $region63: #{tpu_custom_call.1} parent=15 // pred_region
          %s618 = sand.u32 %s350, 1
          %s619 = scalar_lea.sflag [#allocation21], %s618
          %s620 = sand.u32 %s350, 1
          %s621 = scalar_lea.vmem [#allocation20], %s620
          %s623 = ssub.s32 16, 16
          %624 = vsyncadd %s619, %s623
          %s625 = smul.addr %s50, 16
          %s626 = scalar_lea.hbm %s11, %s625
          %s628 = sshll.u32 %s621, 4
          %s629 = int_to_ptr.vmem [resolvable:$true] %s628
          %631 = dma.hbm_to_vmem [thread:$0]  %s626, 16, %s629, %s619
        $region64: #{tpu_custom_call.1} parent=15 // pred_fallthru
          _
      $region16: #{tpu_custom_call.1} parent=5 // pred_fallthru
        _
      %p632 = scmp.le.s32.totalorder 1, %s42
      %p633 = scmp.lt.s32.totalorder %s42, 5
      %p634 = pnand %p632, %p633
      %p635 = pneg %p634
      // Predicated region
      $region65: #{tpu_custom_call.1} parent=5 // pred_check
        _
      $region66: #{tpu_custom_call.1} parent=5 // pred_check_branch
        %637 = sbr.rel (%p634) target = $region68
      $region67: #{tpu_custom_call.1} parent=5 // pred_region
        %s638 = ssub.s32 %s42, 1
        %s639 = sand.u32 %s67, 1
        %s640 = scalar_lea.sflag [#allocation3], %s639
        %s641 = sand.u32 %s67, 1
        %s642 = smul.addr %s641, 8
        %s643 = scalar_lea.vmem [#allocation2], %s642
        // Predicated region
        $region69: #{tpu_custom_call.1} parent=67 // pred_check
          %p644 = pneg %p80
        $region70: #{tpu_custom_call.1} parent=67 // pred_check_branch
          %646 = sbr.rel (%p644) target = $region72
        $region71: #{tpu_custom_call.1} parent=67 // pred_region
          %647 = dma.done %s640, 128
        $region72: #{tpu_custom_call.1} parent=67 // pred_fallthru
          _
        %s648 = sand.u32 %s47, 1
        %s649 = scalar_lea.sflag [#allocation6], %s648
        %s650 = sand.u32 %s93, 1
        %s651 = scalar_lea.vmem [#allocation5], %s650
        // Predicated region
        $region73: #{tpu_custom_call.1} parent=67 // pred_check
          %p652 = pneg %p106
        $region74: #{tpu_custom_call.1} parent=67 // pred_check_branch
          %654 = sbr.rel (%p652) target = $region76
        $region75: #{tpu_custom_call.1} parent=67 // pred_region
          %655 = dma.done %s649, 16
        $region76: #{tpu_custom_call.1} parent=67 // pred_fallthru
          _
        %s656 = sand.u32 %s47, 1
        %s657 = scalar_lea.sflag [#allocation6], %s656
        %s658 = sand.u32 %s119, 1
        %s659 = scalar_lea.vmem [#allocation7], %s658
        // Predicated region
        $region77: #{tpu_custom_call.1} parent=67 // pred_check
          %p660 = pneg %p132
        $region78: #{tpu_custom_call.1} parent=67 // pred_check_branch
          %662 = sbr.rel (%p660) target = $region80
        $region79: #{tpu_custom_call.1} parent=67 // pred_region
          %663 = dma.done %s657, 16
        $region80: #{tpu_custom_call.1} parent=67 // pred_fallthru
          _
        %s664 = sand.u32 %s47, 1
        %s665 = scalar_lea.sflag [#allocation9], %s664
        %s666 = sand.u32 %s145, 1
        %s667 = smul.addr %s666, 16
        %s668 = scalar_lea.vmem [#allocation8], %s667
        // Predicated region
        $region81: #{tpu_custom_call.1} parent=67 // pred_check
          %p669 = pneg %p158
        $region82: #{tpu_custom_call.1} parent=67 // pred_check_branch
          %671 = sbr.rel (%p669) target = $region84
        $region83: #{tpu_custom_call.1} parent=67 // pred_region
          %672 = dma.done %s665, 256
        $region84: #{tpu_custom_call.1} parent=67 // pred_fallthru
          _
        %s673 = sand.u32 %s47, 1
        %s674 = scalar_lea.sflag [#allocation9], %s673
        %s675 = sand.u32 %s171, 1
        %s676 = smul.addr %s675, 16
        %s677 = scalar_lea.vmem [#allocation10], %s676
        // Predicated region
        $region85: #{tpu_custom_call.1} parent=67 // pred_check
          %p678 = pneg %p184
        $region86: #{tpu_custom_call.1} parent=67 // pred_check_branch
          %680 = sbr.rel (%p678) target = $region88
        $region87: #{tpu_custom_call.1} parent=67 // pred_region
          %681 = dma.done %s674, 256
        $region88: #{tpu_custom_call.1} parent=67 // pred_fallthru
          _
        %s682 = sand.u32 %s47, 1
        %s683 = scalar_lea.sflag [#allocation12], %s682
        %s684 = sand.u32 %s197, 1
        %s685 = scalar_lea.vmem [#allocation11], %s684
        // Predicated region
        $region89: #{tpu_custom_call.1} parent=67 // pred_check
          %p686 = pneg %p210
        $region90: #{tpu_custom_call.1} parent=67 // pred_check_branch
          %688 = sbr.rel (%p686) target = $region92
        $region91: #{tpu_custom_call.1} parent=67 // pred_region
          %689 = dma.done %s683, 16
        $region92: #{tpu_custom_call.1} parent=67 // pred_fallthru
          _
        %s690 = sand.u32 %s47, 1
        %s691 = scalar_lea.sflag [#allocation12], %s690
        %s692 = sand.u32 %s223, 1
        %s693 = scalar_lea.vmem [#allocation13], %s692
        // Predicated region
        $region93: #{tpu_custom_call.1} parent=67 // pred_check
          %p694 = pneg %p236
        $region94: #{tpu_custom_call.1} parent=67 // pred_check_branch
          %696 = sbr.rel (%p694) target = $region96
        $region95: #{tpu_custom_call.1} parent=67 // pred_region
          %697 = dma.done %s691, 16
        $region96: #{tpu_custom_call.1} parent=67 // pred_fallthru
          _
        %s698 = sand.u32 %s47, 1
        %s699 = scalar_lea.sflag [#allocation15], %s698
        %s700 = sand.u32 %s249, 1
        %s701 = scalar_lea.vmem [#allocation14], %s700
        // Predicated region
        $region97: #{tpu_custom_call.1} parent=67 // pred_check
          %p702 = pneg %p262
        $region98: #{tpu_custom_call.1} parent=67 // pred_check_branch
          %704 = sbr.rel (%p702) target = $region100
        $region99: #{tpu_custom_call.1} parent=67 // pred_region
          %705 = dma.done %s699, 16
        $region100: #{tpu_custom_call.1} parent=67 // pred_fallthru
          _
        %s706 = sand.u32 %s47, 1
        %s707 = scalar_lea.sflag [#allocation15], %s706
        %s708 = sand.u32 %s275, 1
        %s709 = smul.addr %s708, 16
        %s710 = scalar_lea.vmem [#allocation16], %s709
        // Predicated region
        $region101: #{tpu_custom_call.1} parent=67 // pred_check
          %p711 = pneg %p288
        $region102: #{tpu_custom_call.1} parent=67 // pred_check_branch
          %713 = sbr.rel (%p711) target = $region104
        $region103: #{tpu_custom_call.1} parent=67 // pred_region
          %714 = dma.done %s707, 256
        $region104: #{tpu_custom_call.1} parent=67 // pred_fallthru
          _
        %s715 = sand.u32 %s47, 1
        %s716 = scalar_lea.sflag [#allocation18], %s715
        %s717 = sand.u32 %s301, 1
        %s718 = scalar_lea.vmem [#allocation17], %s717
        // Predicated region
        $region105: #{tpu_custom_call.1} parent=67 // pred_check
          %p719 = pneg %p314
        $region106: #{tpu_custom_call.1} parent=67 // pred_check_branch
          %721 = sbr.rel (%p719) target = $region108
        $region107: #{tpu_custom_call.1} parent=67 // pred_region
          %722 = dma.done %s716, 16
        $region108: #{tpu_custom_call.1} parent=67 // pred_fallthru
          _
        %s723 = sand.u32 %s47, 1
        %s724 = scalar_lea.sflag [#allocation18], %s723
        %s725 = sand.u32 %s327, 1
        %s726 = smul.addr %s725, 32
        %s727 = scalar_lea.vmem [#allocation19], %s726
        // Predicated region
        $region109: #{tpu_custom_call.1} parent=67 // pred_check
          %p728 = pneg %p340
        $region110: #{tpu_custom_call.1} parent=67 // pred_check_branch
          %730 = sbr.rel (%p728) target = $region112
        $region111: #{tpu_custom_call.1} parent=67 // pred_region
          %731 = dma.done %s724, 512
        $region112: #{tpu_custom_call.1} parent=67 // pred_fallthru
          _
        %s732 = sand.u32 %s353, 1
        %s733 = scalar_lea.sflag [#allocation21], %s732
        %s734 = sand.u32 %s353, 1
        %s735 = scalar_lea.vmem [#allocation20], %s734
        // Predicated region
        $region113: #{tpu_custom_call.1} parent=67 // pred_check
          %p736 = pneg %p366
        $region114: #{tpu_custom_call.1} parent=67 // pred_check_branch
          %738 = sbr.rel (%p736) target = $region116
        $region115: #{tpu_custom_call.1} parent=67 // pred_region
          %739 = dma.done %s733, 16
        $region116: #{tpu_custom_call.1} parent=67 // pred_fallthru
          _
        %s740 = sand.u32 %s67, 1
        %s741 = scalar_lea.sflag [#allocation3], %s740
        %s742 = sand.u32 %s67, 1
        %s743 = smul.addr %s742, 8
        %s744 = scalar_lea.vmem [#allocation2], %s743
        %p745 = pneg %p80
        %p746 = pneg %p77
        %s747 = sand.u32 %s47, 1
        %s748 = scalar_lea.sflag [#allocation6], %s747
        %s749 = sand.u32 %s93, 1
        %s750 = scalar_lea.vmem [#allocation5], %s749
        %p751 = pneg %p106
        %p752 = pneg %p103
        %s753 = sand.u32 %s47, 1
        %s754 = scalar_lea.sflag [#allocation6], %s753
        %s755 = sand.u32 %s119, 1
        %s756 = scalar_lea.vmem [#allocation7], %s755
        %p757 = pneg %p132
        %p758 = pneg %p129
        %s759 = sand.u32 %s47, 1
        %s760 = scalar_lea.sflag [#allocation9], %s759
        %s761 = sand.u32 %s145, 1
        %s762 = smul.addr %s761, 16
        %s763 = scalar_lea.vmem [#allocation8], %s762
        %p764 = pneg %p158
        %p765 = pneg %p155
        %s766 = sand.u32 %s47, 1
        %s767 = scalar_lea.sflag [#allocation9], %s766
        %s768 = sand.u32 %s171, 1
        %s769 = smul.addr %s768, 16
        %s770 = scalar_lea.vmem [#allocation10], %s769
        %p771 = pneg %p184
        %p772 = pneg %p181
        %s773 = sand.u32 %s47, 1
        %s774 = scalar_lea.sflag [#allocation12], %s773
        %s775 = sand.u32 %s197, 1
        %s776 = scalar_lea.vmem [#allocation11], %s775
        %p777 = pneg %p210
        %p778 = pneg %p207
        %s779 = sand.u32 %s47, 1
        %s780 = scalar_lea.sflag [#allocation12], %s779
        %s781 = sand.u32 %s223, 1
        %s782 = scalar_lea.vmem [#allocation13], %s781
        %p783 = pneg %p236
        %p784 = pneg %p233
        %s785 = sand.u32 %s47, 1
        %s786 = scalar_lea.sflag [#allocation15], %s785
        %s787 = sand.u32 %s249, 1
        %s788 = scalar_lea.vmem [#allocation14], %s787
        %p789 = pneg %p262
        %p790 = pneg %p259
        %s791 = sand.u32 %s47, 1
        %s792 = scalar_lea.sflag [#allocation15], %s791
        %s793 = sand.u32 %s275, 1
        %s794 = smul.addr %s793, 16
        %s795 = scalar_lea.vmem [#allocation16], %s794
        %p796 = pneg %p288
        %p797 = pneg %p285
        %s798 = sand.u32 %s47, 1
        %s799 = scalar_lea.sflag [#allocation18], %s798
        %s800 = sand.u32 %s301, 1
        %s801 = scalar_lea.vmem [#allocation17], %s800
        %p802 = pneg %p314
        %p803 = pneg %p311
        %s804 = sand.u32 %s47, 1
        %s805 = scalar_lea.sflag [#allocation18], %s804
        %s806 = sand.u32 %s327, 1
        %s807 = smul.addr %s806, 32
        %s808 = scalar_lea.vmem [#allocation19], %s807
        %p809 = pneg %p340
        %p810 = pneg %p337
        %s811 = sand.u32 %s353, 1
        %s812 = scalar_lea.sflag [#allocation21], %s811
        %s813 = sand.u32 %s353, 1
        %s814 = scalar_lea.vmem [#allocation20], %s813
        %p815 = pneg %p366
        %p816 = pneg %p363
        %p817 = pneg %p392
        %p818 = pneg %p389
        %s819 = sand.u32 %s379, 1
        %s820 = scalar_lea.sflag [#allocation4], %s819
        %s821 = sand.u32 %s379, 1
        %s822 = smul.addr %s821, 8
        %s823 = scalar_lea.vmem [#allocation22], %s822
        %p825 = scmp.eq.s32.totalorder %s52, 0
        // Predicated region
        $region117: #{tpu_custom_call.1} parent=67 // pred_check
          %p826 = pneg %p825
        $region118: #{tpu_custom_call.1} parent=67 // pred_check_branch
          %828 = sbr.rel (%p826) target = $region120
        $region119: #{tpu_custom_call.1} parent=67 // pred_region
          %v829 = vld [vmem:[%s643] sm:$0xff]
          %vm830 = vcmask 261120
          %831 = vst.msk [vmem:[%s823] sm:$0xff] %vm830, %v829
        $region120: #{tpu_custom_call.1} parent=67 // pred_fallthru
          _
        %v832 = vld [vmem:[%s823] sm:$0xff]
        %v833 = vld [vmem:[%s651] sm:$0x1]
        %v834 = vld [vmem:[%s659] sm:$0x1]
        %vm835 = vcmask 261120
        %v836 = vsel %vm835, %v832, 0.0
        %837 = vadd.xlane.f32.xlu0 %v836
        %v838 = vpop.xlane.xlu0 %837
        %v839 = vrcp.pop 32.0
        %v840 = vmul.f32 %v838, %v839
        %v841 = vsub.f32 %v832, %v840
        %v842 = vmul.f32 %v841, %v841
        %v843 = vsel %vm835, %v842, 0.0
        %844 = vadd.xlane.f32.xlu0 %v843
        %v845 = vpop.xlane.xlu0 %844
        %v846 = vmul.f32 %v845, %v839
        %v847 = vadd.f32 %v846, 1e-05
        %v848 = vrsqrt.pop %v847
        %v849 = vmul.f32 %v841, %v848
        %v851 = vlaneseq
        %v852 = vshrl.u32 %v851, 7
        %v853 = vsub.s32 0, %v852
        %v854 = vrot.slane %v833, %v853
        %v856 = vmul.f32 %v849, %v854
        %v858 = vlaneseq
        %v859 = vshrl.u32 %v858, 7
        %v860 = vsub.s32 0, %v859
        %v861 = vrot.slane %v834, %v860
        %v863 = vadd.f32 %v856, %v861
        %v864 = vpack.c.bf16 %v863, %v863
        %v865 = vld [vmem:[%s668] sm:$0xf]
        %v866 = vld [vmem:[%s668 + $0x4] sm:$0xf]
        %v867 = vld [vmem:[%s668 + $0x8] sm:$0xf]
        %v868 = vld [vmem:[%s668 + $0xc] sm:$0xf]
        %v873 = vunpack.c.l.b16 %v865
        %v874 = vunpack.c.l.b16 %v866
        %v875 = vunpack.c.l.b16 %v867
        %v876 = vunpack.c.l.b16 %v868
        %v877 = vpack.c.b16 %v874, %v873
        %v878 = vpack.c.b16 %v876, %v875
        %v882 = vsel %vm835, %v864, 0
        %884 = vmatprep.subr.bf16.mxu0 0
        %885 = vmatpush1.bf16.msra.mxu0 %v877
        %886 = vmatprep.subr.bf16.mxu0 0
        %887 = vmatpush1.bf16.msra.mxu0 %v878
        %888 = vmatprep.subr.bf16.mxu0 0
        %889 = vmatpush1.bf16.msra.mxu0 0
        %890 = vmatprep.subr.bf16.mxu0 0
        %891 = vmatpush1.bf16.msra.mxu0 0
        %892 = vmatprep.subr.bf16.mxu0 0
        %893 = vmatpush1.bf16.msra.mxu0 0
        %894 = vmatprep.subr.bf16.mxu0 0
        %895 = vmatpush1.bf16.msra.mxu0 0
        %896 = vmatprep.subr.bf16.mxu0 0
        %897 = vmatpush1.bf16.msra.mxu0 0
        %898 = vmatprep.subr.bf16.mxu0 0
        %899 = vmatpush1.bf16.msra.mxu0 0
        %900 = vmatprep.subr.bf16.mxu0 0
        %901 = vmatpush1.bf16.msra.mxu0 0
        %902 = vmatprep.subr.bf16.mxu0 0
        %903 = vmatpush1.bf16.msra.mxu0 0
        %904 = vmatprep.subr.bf16.mxu0 0
        %905 = vmatpush1.bf16.msra.mxu0 0
        %906 = vmatprep.subr.bf16.mxu0 0
        %907 = vmatpush1.bf16.msra.mxu0 0
        %908 = vmatprep.subr.bf16.mxu0 0
        %909 = vmatpush1.bf16.msra.mxu0 0
        %910 = vmatprep.subr.bf16.mxu0 0
        %911 = vmatpush1.bf16.msra.mxu0 0
        %912 = vmatprep.subr.bf16.mxu0 0
        %913 = vmatpush1.bf16.msra.mxu0 0
        %914 = vmatprep.subr.bf16.mxu0 0
        %915 = vmatpush1.bf16.msra.mxu0 0
        %916 = vmatprep.mubr.bf16.mxu0 0
        %917 = vmatmul.mubr.bf16.gmra.mrb[0].mxu0 %v882
        %v918 = vpop.f32.mrb[0].mxu0
        %v919 = vadd.f32 0.0, %v918
        %v920 = vpop.f32.mrb[0].mxu0
        %v921 = vpop.f32.mrb[0].mxu0
        %v922 = vpop.f32.mrb[0].mxu0
        %923 = vdwg.mxu0
        %v924 = vmul.f32 %v919, 0.35355338
        %v925 = vpack.c.bf16 %v924, %v924
        %927 = vrot.lane.b32.xlu0 %v925, 120
        %v928 = vpop.permute.xlu0 %927
        %929 = vrot.lane.b32.xlu0 %v925, 112
        %v930 = vpop.permute.xlu0 %929
        %931 = vrot.lane.b32.xlu0 %v925, 104
        %v932 = vpop.permute.xlu0 %931
        %v933 = vpack.c.bf16 %v919, %v919
        %935 = vrot.lane.b32.xlu0 %v933, 120
        %v936 = vpop.permute.xlu0 %935
        %937 = vrot.lane.b32.xlu0 %v933, 112
        %v938 = vpop.permute.xlu0 %937
        %939 = vrot.lane.b32.xlu0 %v933, 104
        %v940 = vpop.permute.xlu0 %939
        %941 = vrot.lane.b32.xlu0 %v933, 96
        %v942 = vpop.permute.xlu0 %941
        %vm943 = vcmask 64512
        %v945 = vsel %vm943, %v925, 0
        %v948 = vsel %vm943, %v942, 0
        %950 = vmatprep.subr.bf16.mxu0 0
        %951 = vmatpush1.bf16.xpose.msra.mxu0 %v948
        %952 = vmatprep.subr.bf16.mxu0 0
        %953 = vmatpush1.bf16.xpose.msra.mxu0 0
        %954 = vmatprep.subr.bf16.mxu0 0
        %955 = vmatpush1.bf16.xpose.msra.mxu0 0
        %956 = vmatprep.subr.bf16.mxu0 0
        %957 = vmatpush1.bf16.xpose.msra.mxu0 0
        %958 = vmatprep.subr.bf16.mxu0 0
        %959 = vmatpush1.bf16.xpose.msra.mxu0 0
        %960 = vmatprep.subr.bf16.mxu0 0
        %961 = vmatpush1.bf16.xpose.msra.mxu0 0
        %962 = vmatprep.subr.bf16.mxu0 0
        %963 = vmatpush1.bf16.xpose.msra.mxu0 0
        %964 = vmatprep.subr.bf16.mxu0 0
        %965 = vmatpush1.bf16.xpose.msra.mxu0 0
        %966 = vmatprep.subr.bf16.mxu0 0
        %967 = vmatpush1.bf16.xpose.msra.mxu0 0
        %968 = vmatprep.subr.bf16.mxu0 0
        %969 = vmatpush1.bf16.xpose.msra.mxu0 0
        %970 = vmatprep.subr.bf16.mxu0 0
        %971 = vmatpush1.bf16.xpose.msra.mxu0 0
        %972 = vmatprep.subr.bf16.mxu0 0
        %973 = vmatpush1.bf16.xpose.msra.mxu0 0
        %974 = vmatprep.subr.bf16.mxu0 0
        %975 = vmatpush1.bf16.xpose.msra.mxu0 0
        %976 = vmatprep.subr.bf16.mxu0 0
        %977 = vmatpush1.bf16.xpose.msra.mxu0 0
        %978 = vmatprep.subr.bf16.mxu0 0
        %979 = vmatpush1.bf16.xpose.msra.mxu0 0
        %980 = vmatprep.subr.bf16.mxu0 0
        %981 = vmatpush1.bf16.xpose.msra.mxu0 0
        %982 = vmatprep.mubr.bf16.mxu0 0
        %983 = vmatmul.mubr.bf16.gmra.mrb[0].mxu0 %v945
        %v984 = vpop.f32.mrb[0].mxu0
        %v985 = vadd.f32 0.0, %v984
        %v986 = vpop.f32.mrb[0].mxu0
        %v987 = vpop.f32.mrb[0].mxu0
        %v988 = vpop.f32.mrb[0].mxu0
        %989 = vdwg.mxu0
        %990 = vrot.lane.b32.xlu0 %v936, 96
        %v991 = vpop.permute.xlu0 %990
        %v993 = vsel %vm943, %v928, 0
        %v996 = vsel %vm943, %v991, 0
        %998 = vmatprep.subr.bf16.mxu0 0
        %999 = vmatpush1.bf16.xpose.msra.mxu0 %v996
        %1000 = vmatprep.subr.bf16.mxu0 0
        %1001 = vmatpush1.bf16.xpose.msra.mxu0 0
        %1002 = vmatprep.subr.bf16.mxu0 0
        %1003 = vmatpush1.bf16.xpose.msra.mxu0 0
        %1004 = vmatprep.subr.bf16.mxu0 0
        %1005 = vmatpush1.bf16.xpose.msra.mxu0 0
        %1006 = vmatprep.subr.bf16.mxu0 0
        %1007 = vmatpush1.bf16.xpose.msra.mxu0 0
        %1008 = vmatprep.subr.bf16.mxu0 0
        %1009 = vmatpush1.bf16.xpose.msra.mxu0 0
        %1010 = vmatprep.subr.bf16.mxu0 0
        %1011 = vmatpush1.bf16.xpose.msra.mxu0 0
        %1012 = vmatprep.subr.bf16.mxu0 0
        %1013 = vmatpush1.bf16.xpose.msra.mxu0 0
        %1014 = vmatprep.subr.bf16.mxu0 0
        %1015 = vmatpush1.bf16.xpose.msra.mxu0 0
        %1016 = vmatprep.subr.bf16.mxu0 0
        %1017 = vmatpush1.bf16.xpose.msra.mxu0 0
        %1018 = vmatprep.subr.bf16.mxu0 0
        %1019 = vmatpush1.bf16.xpose.msra.mxu0 0
        %1020 = vmatprep.subr.bf16.mxu0 0
        %1021 = vmatpush1.bf16.xpose.msra.mxu0 0
        %1022 = vmatprep.subr.bf16.mxu0 0
        %1023 = vmatpush1.bf16.xpose.msra.mxu0 0
        %1024 = vmatprep.subr.bf16.mxu0 0
        %1025 = vmatpush1.bf16.xpose.msra.mxu0 0
        %1026 = vmatprep.subr.bf16.mxu0 0
        %1027 = vmatpush1.bf16.xpose.msra.mxu0 0
        %1028 = vmatprep.subr.bf16.mxu0 0
        %1029 = vmatpush1.bf16.xpose.msra.mxu0 0
        %1030 = vmatprep.mubr.bf16.mxu0 0
        %1031 = vmatmul.mubr.bf16.gmra.mrb[0].mxu0 %v993
        %v1032 = vpop.f32.mrb[0].mxu0
        %v1033 = vadd.f32 0.0, %v1032
        %v1034 = vpop.f32.mrb[0].mxu0
        %v1035 = vpop.f32.mrb[0].mxu0
        %v1036 = vpop.f32.mrb[0].mxu0
        %1037 = vdwg.mxu0
        %1038 = vrot.lane.b32.xlu0 %v938, 96
        %v1039 = vpop.permute.xlu0 %1038
        %v1041 = vsel %vm943, %v930, 0
        %v1044 = vsel %vm943, %v1039, 0
        %1046 = vmatprep.subr.bf16.mxu0 0
        %1047 = vmatpush1.bf16.xpose.msra.mxu0 %v1044
        %1048 = vmatprep.subr.bf16.mxu0 0
        %1049 = vmatpush1.bf16.xpose.msra.mxu0 0
        %1050 = vmatprep.subr.bf16.mxu0 0
        %1051 = vmatpush1.bf16.xpose.msra.mxu0 0
        %1052 = vmatprep.subr.bf16.mxu0 0
        %1053 = vmatpush1.bf16.xpose.msra.mxu0 0
        %1054 = vmatprep.subr.bf16.mxu0 0
        %1055 = vmatpush1.bf16.xpose.msra.mxu0 0
        %1056 = vmatprep.subr.bf16.mxu0 0
        %1057 = vmatpush1.bf16.xpose.msra.mxu0 0
        %1058 = vmatprep.subr.bf16.mxu0 0
        %1059 = vmatpush1.bf16.xpose.msra.mxu0 0
        %1060 = vmatprep.subr.bf16.mxu0 0
        %1061 = vmatpush1.bf16.xpose.msra.mxu0 0
        %1062 = vmatprep.subr.bf16.mxu0 0
        %1063 = vmatpush1.bf16.xpose.msra.mxu0 0
        %1064 = vmatprep.subr.bf16.mxu0 0
        %1065 = vmatpush1.bf16.xpose.msra.mxu0 0
        %1066 = vmatprep.subr.bf16.mxu0 0
        %1067 = vmatpush1.bf16.xpose.msra.mxu0 0
        %1068 = vmatprep.subr.bf16.mxu0 0
        %1069 = vmatpush1.bf16.xpose.msra.mxu0 0
        %1070 = vmatprep.subr.bf16.mxu0 0
        %1071 = vmatpush1.bf16.xpose.msra.mxu0 0
        %1072 = vmatprep.subr.bf16.mxu0 0
        %1073 = vmatpush1.bf16.xpose.msra.mxu0 0
        %1074 = vmatprep.subr.bf16.mxu0 0
        %1075 = vmatpush1.bf16.xpose.msra.mxu0 0
        %1076 = vmatprep.subr.bf16.mxu0 0
        %1077 = vmatpush1.bf16.xpose.msra.mxu0 0
        %1078 = vmatprep.mubr.bf16.mxu0 0
        %1079 = vmatmul.mubr.bf16.gmra.mrb[0].mxu0 %v1041
        %v1080 = vpop.f32.mrb[0].mxu0
        %v1081 = vadd.f32 0.0, %v1080
        %v1082 = vpop.f32.mrb[0].mxu0
        %v1083 = vpop.f32.mrb[0].mxu0
        %v1084 = vpop.f32.mrb[0].mxu0
        %1085 = vdwg.mxu0
        %1086 = vrot.lane.b32.xlu0 %v940, 96
        %v1087 = vpop.permute.xlu0 %1086
        %v1089 = vsel %vm943, %v932, 0
        %v1092 = vsel %vm943, %v1087, 0
        %1094 = vmatprep.subr.bf16.mxu0 0
        %1095 = vmatpush1.bf16.xpose.msra.mxu0 %v1092
        %1096 = vmatprep.subr.bf16.mxu0 0
        %1097 = vmatpush1.bf16.xpose.msra.mxu0 0
        %1098 = vmatprep.subr.bf16.mxu0 0
        %1099 = vmatpush1.bf16.xpose.msra.mxu0 0
        %1100 = vmatprep.subr.bf16.mxu0 0
        %1101 = vmatpush1.bf16.xpose.msra.mxu0 0
        %1102 = vmatprep.subr.bf16.mxu0 0
        %1103 = vmatpush1.bf16.xpose.msra.mxu0 0
        %1104 = vmatprep.subr.bf16.mxu0 0
        %1105 = vmatpush1.bf16.xpose.msra.mxu0 0
        %1106 = vmatprep.subr.bf16.mxu0 0
        %1107 = vmatpush1.bf16.xpose.msra.mxu0 0
        %1108 = vmatprep.subr.bf16.mxu0 0
        %1109 = vmatpush1.bf16.xpose.msra.mxu0 0
        %1110 = vmatprep.subr.bf16.mxu0 0
        %1111 = vmatpush1.bf16.xpose.msra.mxu0 0
        %1112 = vmatprep.subr.bf16.mxu0 0
        %1113 = vmatpush1.bf16.xpose.msra.mxu0 0
        %1114 = vmatprep.subr.bf16.mxu0 0
        %1115 = vmatpush1.bf16.xpose.msra.mxu0 0
        %1116 = vmatprep.subr.bf16.mxu0 0
        %1117 = vmatpush1.bf16.xpose.msra.mxu0 0
        %1118 = vmatprep.subr.bf16.mxu0 0
        %1119 = vmatpush1.bf16.xpose.msra.mxu0 0
        %1120 = vmatprep.subr.bf16.mxu0 0
        %1121 = vmatpush1.bf16.xpose.msra.mxu0 0
        %1122 = vmatprep.subr.bf16.mxu0 0
        %1123 = vmatpush1.bf16.xpose.msra.mxu0 0
        %1124 = vmatprep.subr.bf16.mxu0 0
        %1125 = vmatpush1.bf16.xpose.msra.mxu0 0
        %1126 = vmatprep.mubr.bf16.mxu0 0
        %1127 = vmatmul.mubr.bf16.gmra.mrb[0].mxu0 %v1089
        %v1128 = vpop.f32.mrb[0].mxu0
        %v1129 = vadd.f32 0.0, %v1128
        %v1130 = vpop.f32.mrb[0].mxu0
        %v1131 = vpop.f32.mrb[0].mxu0
        %v1132 = vpop.f32.mrb[0].mxu0
        %1133 = vdwg.mxu0
        %v1134 = vsel %vm943, %v985, -inf
        %1135 = vmax.xlane.f32.xlu0 %v1134
        %v1136 = vpop.xlane.xlu0 %1135
        %v1137 = vsel %vm943, %v1033, -inf
        %1138 = vmax.xlane.f32.xlu0 %v1137
        %v1139 = vpop.xlane.xlu0 %1138
        %v1140 = vsel %vm943, %v1081, -inf
        %1141 = vmax.xlane.f32.xlu0 %v1140
        %v1142 = vpop.xlane.xlu0 %1141
        %v1143 = vsel %vm943, %v1129, -inf
        %1144 = vmax.xlane.f32.xlu0 %v1143
        %v1145 = vpop.xlane.xlu0 %1144
        %v1146 = vsub.f32 %v985, %v1136
        %v1147 = vsub.f32 %v1033, %v1139
        %v1148 = vsub.f32 %v1081, %v1142
        %v1149 = vsub.f32 %v1129, %v1145
        %v1150 = vmul.f32 %v1146, 1.442695
        %v1151 = vpow.pop %v1150
        %v1152 = vmul.f32 %v1147, 1.442695
        %v1153 = vpow.pop %v1152
        %v1154 = vmul.f32 %v1148, 1.442695
        %v1155 = vpow.pop %v1154
        %v1156 = vmul.f32 %v1149, 1.442695
        %v1157 = vpow.pop %v1156
        %v1158 = vsel %vm943, %v1151, 0.0
        %1159 = vadd.xlane.f32.xlu0 %v1158
        %v1160 = vpop.xlane.xlu0 %1159
        %v1161 = vsel %vm943, %v1153, 0.0
        %1162 = vadd.xlane.f32.xlu0 %v1161
        %v1163 = vpop.xlane.xlu0 %1162
        %v1164 = vsel %vm943, %v1155, 0.0
        %1165 = vadd.xlane.f32.xlu0 %v1164
        %v1166 = vpop.xlane.xlu0 %1165
        %v1167 = vsel %vm943, %v1157, 0.0
        %1168 = vadd.xlane.f32.xlu0 %v1167
        %v1169 = vpop.xlane.xlu0 %1168
        %v1170 = vrcp.pop %v1160
        %v1171 = vrcp.pop %v1163
        %v1172 = vrcp.pop %v1166
        %v1173 = vrcp.pop %v1169
        %v1174 = vmul.f32 %v1151, %v1170
        %v1175 = vmul.f32 %v1153, %v1171
        %v1176 = vmul.f32 %v1155, %v1172
        %v1177 = vmul.f32 %v1157, %v1173
        %v1178 = vpack.c.bf16 %v1174, %v1174
        %v1179 = vpack.c.bf16 %v1175, %v1175
        %v1180 = vpack.c.bf16 %v1176, %v1176
        %v1181 = vpack.c.bf16 %v1177, %v1177
        %1182 = vrot.lane.b32.xlu0 %v933, 64
        %v1183 = vpop.permute.xlu0 %1182
        %v1185 = vsel %vm943, %v1178, 0
        %vm1187 = vcmask 1043456
        %v1189 = vsel %vm1187, %v1183, 0
        %1191 = vmatprep.subr.bf16.mxu0 0
        %1192 = vmatpush1.bf16.msra.mxu0 %v1189
        %1193 = vmatprep.subr.bf16.mxu0 0
        %1194 = vmatpush1.bf16.msra.mxu0 0
        %1195 = vmatprep.subr.bf16.mxu0 0
        %1196 = vmatpush1.bf16.msra.mxu0 0
        %1197 = vmatprep.subr.bf16.mxu0 0
        %1198 = vmatpush1.bf16.msra.mxu0 0
        %1199 = vmatprep.subr.bf16.mxu0 0
        %1200 = vmatpush1.bf16.msra.mxu0 0
        %1201 = vmatprep.subr.bf16.mxu0 0
        %1202 = vmatpush1.bf16.msra.mxu0 0
        %1203 = vmatprep.subr.bf16.mxu0 0
        %1204 = vmatpush1.bf16.msra.mxu0 0
        %1205 = vmatprep.subr.bf16.mxu0 0
        %1206 = vmatpush1.bf16.msra.mxu0 0
        %1207 = vmatprep.subr.bf16.mxu0 0
        %1208 = vmatpush1.bf16.msra.mxu0 0
        %1209 = vmatprep.subr.bf16.mxu0 0
        %1210 = vmatpush1.bf16.msra.mxu0 0
        %1211 = vmatprep.subr.bf16.mxu0 0
        %1212 = vmatpush1.bf16.msra.mxu0 0
        %1213 = vmatprep.subr.bf16.mxu0 0
        %1214 = vmatpush1.bf16.msra.mxu0 0
        %1215 = vmatprep.subr.bf16.mxu0 0
        %1216 = vmatpush1.bf16.msra.mxu0 0
        %1217 = vmatprep.subr.bf16.mxu0 0
        %1218 = vmatpush1.bf16.msra.mxu0 0
        %1219 = vmatprep.subr.bf16.mxu0 0
        %1220 = vmatpush1.bf16.msra.mxu0 0
        %1221 = vmatprep.subr.bf16.mxu0 0
        %1222 = vmatpush1.bf16.msra.mxu0 0
        %1223 = vmatprep.mubr.bf16.mxu0 0
        %1224 = vmatmul.mubr.bf16.gmra.mrb[0].mxu0 %v1185
        %v1225 = vpop.f32.mrb[0].mxu0
        %v1226 = vadd.f32 0.0, %v1225
        %v1227 = vpop.f32.mrb[0].mxu0
        %v1228 = vpop.f32.mrb[0].mxu0
        %v1229 = vpop.f32.mrb[0].mxu0
        %1230 = vdwg.mxu0
        %1231 = vrot.lane.b32.xlu0 %v936, 64
        %v1232 = vpop.permute.xlu0 %1231
        %v1234 = vsel %vm943, %v1179, 0
        %v1237 = vsel %vm1187, %v1232, 0
        %1239 = vmatprep.subr.bf16.mxu0 0
        %1240 = vmatpush1.bf16.msra.mxu0 %v1237
        %1241 = vmatprep.subr.bf16.mxu0 0
        %1242 = vmatpush1.bf16.msra.mxu0 0
        %1243 = vmatprep.subr.bf16.mxu0 0
        %1244 = vmatpush1.bf16.msra.mxu0 0
        %1245 = vmatprep.subr.bf16.mxu0 0
        %1246 = vmatpush1.bf16.msra.mxu0 0
        %1247 = vmatprep.subr.bf16.mxu0 0
        %1248 = vmatpush1.bf16.msra.mxu0 0
        %1249 = vmatprep.subr.bf16.mxu0 0
        %1250 = vmatpush1.bf16.msra.mxu0 0
        %1251 = vmatprep.subr.bf16.mxu0 0
        %1252 = vmatpush1.bf16.msra.mxu0 0
        %1253 = vmatprep.subr.bf16.mxu0 0
        %1254 = vmatpush1.bf16.msra.mxu0 0
        %1255 = vmatprep.subr.bf16.mxu0 0
        %1256 = vmatpush1.bf16.msra.mxu0 0
        %1257 = vmatprep.subr.bf16.mxu0 0
        %1258 = vmatpush1.bf16.msra.mxu0 0
        %1259 = vmatprep.subr.bf16.mxu0 0
        %1260 = vmatpush1.bf16.msra.mxu0 0
        %1261 = vmatprep.subr.bf16.mxu0 0
        %1262 = vmatpush1.bf16.msra.mxu0 0
        %1263 = vmatprep.subr.bf16.mxu0 0
        %1264 = vmatpush1.bf16.msra.mxu0 0
        %1265 = vmatprep.subr.bf16.mxu0 0
        %1266 = vmatpush1.bf16.msra.mxu0 0
        %1267 = vmatprep.subr.bf16.mxu0 0
        %1268 = vmatpush1.bf16.msra.mxu0 0
        %1269 = vmatprep.subr.bf16.mxu0 0
        %1270 = vmatpush1.bf16.msra.mxu0 0
        %1271 = vmatprep.mubr.bf16.mxu0 0
        %1272 = vmatmul.mubr.bf16.gmra.mrb[0].mxu0 %v1234
        %v1273 = vpop.f32.mrb[0].mxu0
        %v1274 = vadd.f32 0.0, %v1273
        %v1275 = vpop.f32.mrb[0].mxu0
        %v1276 = vpop.f32.mrb[0].mxu0
        %v1277 = vpop.f32.mrb[0].mxu0
        %1278 = vdwg.mxu0
        %1279 = vrot.lane.b32.xlu0 %v938, 64
        %v1280 = vpop.permute.xlu0 %1279
        %v1282 = vsel %vm943, %v1180, 0
        %v1285 = vsel %vm1187, %v1280, 0
        %1287 = vmatprep.subr.bf16.mxu0 0
        %1288 = vmatpush1.bf16.msra.mxu0 %v1285
        %1289 = vmatprep.subr.bf16.mxu0 0
        %1290 = vmatpush1.bf16.msra.mxu0 0
        %1291 = vmatprep.subr.bf16.mxu0 0
        %1292 = vmatpush1.bf16.msra.mxu0 0
        %1293 = vmatprep.subr.bf16.mxu0 0
        %1294 = vmatpush1.bf16.msra.mxu0 0
        %1295 = vmatprep.subr.bf16.mxu0 0
        %1296 = vmatpush1.bf16.msra.mxu0 0
        %1297 = vmatprep.subr.bf16.mxu0 0
        %1298 = vmatpush1.bf16.msra.mxu0 0
        %1299 = vmatprep.subr.bf16.mxu0 0
        %1300 = vmatpush1.bf16.msra.mxu0 0
        %1301 = vmatprep.subr.bf16.mxu0 0
        %1302 = vmatpush1.bf16.msra.mxu0 0
        %1303 = vmatprep.subr.bf16.mxu0 0
        %1304 = vmatpush1.bf16.msra.mxu0 0
        %1305 = vmatprep.subr.bf16.mxu0 0
        %1306 = vmatpush1.bf16.msra.mxu0 0
        %1307 = vmatprep.subr.bf16.mxu0 0
        %1308 = vmatpush1.bf16.msra.mxu0 0
        %1309 = vmatprep.subr.bf16.mxu0 0
        %1310 = vmatpush1.bf16.msra.mxu0 0
        %1311 = vmatprep.subr.bf16.mxu0 0
        %1312 = vmatpush1.bf16.msra.mxu0 0
        %1313 = vmatprep.subr.bf16.mxu0 0
        %1314 = vmatpush1.bf16.msra.mxu0 0
        %1315 = vmatprep.subr.bf16.mxu0 0
        %1316 = vmatpush1.bf16.msra.mxu0 0
        %1317 = vmatprep.subr.bf16.mxu0 0
        %1318 = vmatpush1.bf16.msra.mxu0 0
        %1319 = vmatprep.mubr.bf16.mxu0 0
        %1320 = vmatmul.mubr.bf16.gmra.mrb[0].mxu0 %v1282
        %v1321 = vpop.f32.mrb[0].mxu0
        %v1322 = vadd.f32 0.0, %v1321
        %v1323 = vpop.f32.mrb[0].mxu0
        %v1324 = vpop.f32.mrb[0].mxu0
        %v1325 = vpop.f32.mrb[0].mxu0
        %1326 = vdwg.mxu0
        %1327 = vrot.lane.b32.xlu0 %v940, 64
        %v1328 = vpop.permute.xlu0 %1327
        %v1330 = vsel %vm943, %v1181, 0
        %v1333 = vsel %vm1187, %v1328, 0
        %1335 = vmatprep.subr.bf16.mxu0 0
        %1336 = vmatpush1.bf16.msra.mxu0 %v1333
        %1337 = vmatprep.subr.bf16.mxu0 0
        %1338 = vmatpush1.bf16.msra.mxu0 0
        %1339 = vmatprep.subr.bf16.mxu0 0
        %1340 = vmatpush1.bf16.msra.mxu0 0
        %1341 = vmatprep.subr.bf16.mxu0 0
        %1342 = vmatpush1.bf16.msra.mxu0 0
        %1343 = vmatprep.subr.bf16.mxu0 0
        %1344 = vmatpush1.bf16.msra.mxu0 0
        %1345 = vmatprep.subr.bf16.mxu0 0
        %1346 = vmatpush1.bf16.msra.mxu0 0
        %1347 = vmatprep.subr.bf16.mxu0 0
        %1348 = vmatpush1.bf16.msra.mxu0 0
        %1349 = vmatprep.subr.bf16.mxu0 0
        %1350 = vmatpush1.bf16.msra.mxu0 0
        %1351 = vmatprep.subr.bf16.mxu0 0
        %1352 = vmatpush1.bf16.msra.mxu0 0
        %1353 = vmatprep.subr.bf16.mxu0 0
        %1354 = vmatpush1.bf16.msra.mxu0 0
        %1355 = vmatprep.subr.bf16.mxu0 0
        %1356 = vmatpush1.bf16.msra.mxu0 0
        %1357 = vmatprep.subr.bf16.mxu0 0
        %1358 = vmatpush1.bf16.msra.mxu0 0
        %1359 = vmatprep.subr.bf16.mxu0 0
        %1360 = vmatpush1.bf16.msra.mxu0 0
        %1361 = vmatprep.subr.bf16.mxu0 0
        %1362 = vmatpush1.bf16.msra.mxu0 0
        %1363 = vmatprep.subr.bf16.mxu0 0
        %1364 = vmatpush1.bf16.msra.mxu0 0
        %1365 = vmatprep.subr.bf16.mxu0 0
        %1366 = vmatpush1.bf16.msra.mxu0 0
        %1367 = vmatprep.mubr.bf16.mxu0 0
        %1368 = vmatmul.mubr.bf16.gmra.mrb[0].mxu0 %v1330
        %v1369 = vpop.f32.mrb[0].mxu0
        %v1370 = vadd.f32 0.0, %v1369
        %v1371 = vpop.f32.mrb[0].mxu0
        %v1372 = vpop.f32.mrb[0].mxu0
        %v1373 = vpop.f32.mrb[0].mxu0
        %1374 = vdwg.mxu0
        %v1375 = vpack.c.bf16 %v1226, %v1226
        %v1376 = vpack.c.bf16 %v1274, %v1274
        %v1377 = vpack.c.bf16 %v1322, %v1322
        %v1378 = vpack.c.bf16 %v1370, %v1370
        %1380 = vrot.lane.b32.xlu0 %v1376, 8
        %v1381 = vpop.permute.xlu0 %1380
        %1383 = vrot.lane.b32.xlu0 %v1377, 16
        %v1384 = vpop.permute.xlu0 %1383
        %1386 = vrot.lane.b32.xlu0 %v1378, 24
        %v1387 = vpop.permute.xlu0 %1386
        %v1390 = vsel %vm943, %v1375, %v1381
        %vm1391 = vcmask 130048
        %v1393 = vsel %vm1391, %v1390, %v1384
        %vm1394 = vcmask 195584
        %v1396 = vsel %vm1394, %v1393, %v1387
        %v1397 = vld [vmem:[%s677] sm:$0xf]
        %v1398 = vld [vmem:[%s677 + $0x4] sm:$0xf]
        %v1399 = vld [vmem:[%s677 + $0x8] sm:$0xf]
        %v1400 = vld [vmem:[%s677 + $0xc] sm:$0xf]
        %v1401 = vld [vmem:[%s685] sm:$0x1]
        %v1403 = vlaneseq
        %v1404 = vshrl.u32 %v1403, 7
        %v1405 = vsub.s32 0, %v1404
        %v1406 = vrot.slane %v1401, %v1405
        %v1412 = vunpack.c.l.b16 %v1397
        %v1413 = vunpack.c.l.b16 %v1398
        %v1414 = vunpack.c.l.b16 %v1399
        %v1415 = vunpack.c.l.b16 %v1400
        %v1416 = vpack.c.b16 %v1413, %v1412
        %v1417 = vpack.c.b16 %v1415, %v1414
        %v1420 = vsel %vm835, %v1396, 0
        %1422 = vmatprep.subr.bf16.mxu0 0
        %1423 = vmatpush1.bf16.msra.mxu0 %v1416
        %1424 = vmatprep.subr.bf16.mxu0 0
        %1425 = vmatpush1.bf16.msra.mxu0 %v1417
        %1426 = vmatprep.subr.bf16.mxu0 0
        %1427 = vmatpush1.bf16.msra.mxu0 0
        %1428 = vmatprep.subr.bf16.mxu0 0
        %1429 = vmatpush1.bf16.msra.mxu0 0
        %1430 = vmatprep.subr.bf16.mxu0 0
        %1431 = vmatpush1.bf16.msra.mxu0 0
        %1432 = vmatprep.subr.bf16.mxu0 0
        %1433 = vmatpush1.bf16.msra.mxu0 0
        %1434 = vmatprep.subr.bf16.mxu0 0
        %1435 = vmatpush1.bf16.msra.mxu0 0
        %1436 = vmatprep.subr.bf16.mxu0 0
        %1437 = vmatpush1.bf16.msra.mxu0 0
        %1438 = vmatprep.subr.bf16.mxu0 0
        %1439 = vmatpush1.bf16.msra.mxu0 0
        %1440 = vmatprep.subr.bf16.mxu0 0
        %1441 = vmatpush1.bf16.msra.mxu0 0
        %1442 = vmatprep.subr.bf16.mxu0 0
        %1443 = vmatpush1.bf16.msra.mxu0 0
        %1444 = vmatprep.subr.bf16.mxu0 0
        %1445 = vmatpush1.bf16.msra.mxu0 0
        %1446 = vmatprep.subr.bf16.mxu0 0
        %1447 = vmatpush1.bf16.msra.mxu0 0
        %1448 = vmatprep.subr.bf16.mxu0 0
        %1449 = vmatpush1.bf16.msra.mxu0 0
        %1450 = vmatprep.subr.bf16.mxu0 0
        %1451 = vmatpush1.bf16.msra.mxu0 0
        %1452 = vmatprep.subr.bf16.mxu0 0
        %1453 = vmatpush1.bf16.msra.mxu0 0
        %1454 = vmatprep.mubr.bf16.mxu0 0
        %1455 = vmatmul.mubr.bf16.gmra.mrb[0].mxu0 %v1420
        %v1456 = vpop.f32.mrb[0].mxu0
        %v1457 = vadd.f32 %v1406, %v1456
        %v1458 = vpop.f32.mrb[0].mxu0
        %v1459 = vpop.f32.mrb[0].mxu0
        %v1460 = vpop.f32.mrb[0].mxu0
        %1461 = vdwg.mxu0
        %v1462 = vadd.f32 %v832, %v1457
        %v1463 = vld [vmem:[%s693] sm:$0x1]
        %v1464 = vld [vmem:[%s701] sm:$0x1]
        %v1465 = vsel %vm835, %v1462, 0.0
        %1466 = vadd.xlane.f32.xlu0 %v1465
        %v1467 = vpop.xlane.xlu0 %1466
        %v1468 = vmul.f32 %v1467, %v839
        %v1469 = vsub.f32 %v1462, %v1468
        %v1470 = vmul.f32 %v1469, %v1469
        %v1471 = vsel %vm835, %v1470, 0.0
        %1472 = vadd.xlane.f32.xlu0 %v1471
        %v1473 = vpop.xlane.xlu0 %1472
        %v1474 = vmul.f32 %v1473, %v839
        %v1475 = vadd.f32 %v1474, 1e-05
        %v1476 = vrsqrt.pop %v1475
        %v1477 = vmul.f32 %v1469, %v1476
        %v1479 = vlaneseq
        %v1480 = vshrl.u32 %v1479, 7
        %v1481 = vsub.s32 0, %v1480
        %v1482 = vrot.slane %v1463, %v1481
        %v1484 = vmul.f32 %v1477, %v1482
        %v1486 = vlaneseq
        %v1487 = vshrl.u32 %v1486, 7
        %v1488 = vsub.s32 0, %v1487
        %v1489 = vrot.slane %v1464, %v1488
        %v1491 = vadd.f32 %v1484, %v1489
        %v1492 = vpack.c.bf16 %v1491, %v1491
        %v1493 = vld [vmem:[%s710] sm:$0xf]
        %v1494 = vld [vmem:[%s710 + $0x4] sm:$0xf]
        %v1495 = vld [vmem:[%s710 + $0x8] sm:$0xf]
        %v1496 = vld [vmem:[%s710 + $0xc] sm:$0xf]
        %v1497 = vld [vmem:[%s718] sm:$0x1]
        %v1499 = vlaneseq
        %v1500 = vshrl.u32 %v1499, 7
        %v1501 = vsub.s32 0, %v1500
        %v1502 = vrot.slane %v1497, %v1501
        %v1508 = vunpack.c.l.b16 %v1493
        %v1509 = vunpack.c.l.b16 %v1494
        %v1510 = vunpack.c.l.b16 %v1495
        %v1511 = vunpack.c.l.b16 %v1496
        %v1512 = vpack.c.b16 %v1509, %v1508
        %v1513 = vpack.c.b16 %v1511, %v1510
        %v1517 = vsel %vm835, %v1492, 0
        %1519 = vmatprep.subr.bf16.mxu0 0
        %1520 = vmatpush1.bf16.msra.mxu0 %v1512
        %1521 = vmatprep.subr.bf16.mxu0 0
        %1522 = vmatpush1.bf16.msra.mxu0 %v1513
        %1523 = vmatprep.subr.bf16.mxu0 0
        %1524 = vmatpush1.bf16.msra.mxu0 0
        %1525 = vmatprep.subr.bf16.mxu0 0
        %1526 = vmatpush1.bf16.msra.mxu0 0
        %1527 = vmatprep.subr.bf16.mxu0 0
        %1528 = vmatpush1.bf16.msra.mxu0 0
        %1529 = vmatprep.subr.bf16.mxu0 0
        %1530 = vmatpush1.bf16.msra.mxu0 0
        %1531 = vmatprep.subr.bf16.mxu0 0
        %1532 = vmatpush1.bf16.msra.mxu0 0
        %1533 = vmatprep.subr.bf16.mxu0 0
        %1534 = vmatpush1.bf16.msra.mxu0 0
        %1535 = vmatprep.subr.bf16.mxu0 0
        %1536 = vmatpush1.bf16.msra.mxu0 0
        %1537 = vmatprep.subr.bf16.mxu0 0
        %1538 = vmatpush1.bf16.msra.mxu0 0
        %1539 = vmatprep.subr.bf16.mxu0 0
        %1540 = vmatpush1.bf16.msra.mxu0 0
        %1541 = vmatprep.subr.bf16.mxu0 0
        %1542 = vmatpush1.bf16.msra.mxu0 0
        %1543 = vmatprep.subr.bf16.mxu0 0
        %1544 = vmatpush1.bf16.msra.mxu0 0
        %1545 = vmatprep.subr.bf16.mxu0 0
        %1546 = vmatpush1.bf16.msra.mxu0 0
        %1547 = vmatprep.subr.bf16.mxu0 0
        %1548 = vmatpush1.bf16.msra.mxu0 0
        %1549 = vmatprep.subr.bf16.mxu0 0
        %1550 = vmatpush1.bf16.msra.mxu0 0
        %1551 = vmatprep.mubr.bf16.mxu0 0
        %1552 = vmatmul.mubr.bf16.gmra.mrb[0].mxu0 %v1517
        %v1553 = vpop.f32.mrb[0].mxu0
        %v1554 = vadd.f32 %v1502, %v1553
        %v1555 = vpop.f32.mrb[0].mxu0
        %v1556 = vpop.f32.mrb[0].mxu0
        %v1557 = vpop.f32.mrb[0].mxu0
        %1558 = vdwg.mxu0
        %v1559 = vmul.f32 %v1554, 0.5
        %v1560 = vmul.f32 %v1554, 0.70710677
        %v1561 = verf.f32.pop %v1560
        %v1562 = vadd.f32 %v1561, 1.0
        %v1563 = vmul.f32 %v1559, %v1562
        %v1564 = vpack.c.bf16 %v1563, %v1563
        %v1565 = vld [vmem:[%s727] sm:$0xf]
        %v1566 = vld [vmem:[%s727 + $0x4] sm:$0xf]
        %v1567 = vld [vmem:[%s727 + $0x8] sm:$0xf]
        %v1568 = vld [vmem:[%s727 + $0xc] sm:$0xf]
        %v1569 = vld [vmem:[%s727 + $0x10] sm:$0xf]
        %v1570 = vld [vmem:[%s727 + $0x14] sm:$0xf]
        %v1571 = vld [vmem:[%s727 + $0x18] sm:$0xf]
        %v1572 = vld [vmem:[%s727 + $0x1c] sm:$0xf]
        %v1573 = vld [vmem:[%s735] sm:$0x1]
        %v1575 = vlaneseq
        %v1576 = vshrl.u32 %v1575, 7
        %v1577 = vsub.s32 0, %v1576
        %v1578 = vrot.slane %v1573, %v1577
        %v1588 = vunpack.c.l.b16 %v1565
        %v1589 = vunpack.c.l.b16 %v1566
        %v1590 = vunpack.c.l.b16 %v1567
        %v1591 = vunpack.c.l.b16 %v1568
        %v1592 = vunpack.c.l.b16 %v1569
        %v1593 = vunpack.c.l.b16 %v1570
        %v1594 = vunpack.c.l.b16 %v1571
        %v1595 = vunpack.c.l.b16 %v1572
        %v1596 = vpack.c.b16 %v1589, %v1588
        %v1597 = vpack.c.b16 %v1591, %v1590
        %v1598 = vpack.c.b16 %v1593, %v1592
        %v1599 = vpack.c.b16 %v1595, %v1594
        %vm1604 = vcmask 523264
        %v1606 = vsel %vm1604, %v1564, 0
        %1608 = vmatprep.subr.bf16.mxu0 0
        %1609 = vmatpush1.bf16.msra.mxu0 %v1596
        %1610 = vmatprep.subr.bf16.mxu0 0
        %1611 = vmatpush1.bf16.msra.mxu0 %v1597
        %1612 = vmatprep.subr.bf16.mxu0 0
        %1613 = vmatpush1.bf16.msra.mxu0 %v1598
        %1614 = vmatprep.subr.bf16.mxu0 0
        %1615 = vmatpush1.bf16.msra.mxu0 %v1599
        %1616 = vmatprep.subr.bf16.mxu0 0
        %1617 = vmatpush1.bf16.msra.mxu0 0
        %1618 = vmatprep.subr.bf16.mxu0 0
        %1619 = vmatpush1.bf16.msra.mxu0 0
        %1620 = vmatprep.subr.bf16.mxu0 0
        %1621 = vmatpush1.bf16.msra.mxu0 0
        %1622 = vmatprep.subr.bf16.mxu0 0
        %1623 = vmatpush1.bf16.msra.mxu0 0
        %1624 = vmatprep.subr.bf16.mxu0 0
        %1625 = vmatpush1.bf16.msra.mxu0 0
        %1626 = vmatprep.subr.bf16.mxu0 0
        %1627 = vmatpush1.bf16.msra.mxu0 0
        %1628 = vmatprep.subr.bf16.mxu0 0
        %1629 = vmatpush1.bf16.msra.mxu0 0
        %1630 = vmatprep.subr.bf16.mxu0 0
        %1631 = vmatpush1.bf16.msra.mxu0 0
        %1632 = vmatprep.subr.bf16.mxu0 0
        %1633 = vmatpush1.bf16.msra.mxu0 0
        %1634 = vmatprep.subr.bf16.mxu0 0
        %1635 = vmatpush1.bf16.msra.mxu0 0
        %1636 = vmatprep.subr.bf16.mxu0 0
        %1637 = vmatpush1.bf16.msra.mxu0 0
        %1638 = vmatprep.subr.bf16.mxu0 0
        %1639 = vmatpush1.bf16.msra.mxu0 0
        %1640 = vmatprep.mubr.bf16.mxu0 0
        %1641 = vmatmul.mubr.bf16.gmra.mrb[0].mxu0 %v1606
        %v1642 = vpop.f32.mrb[0].mxu0
        %v1643 = vadd.f32 %v1578, %v1642
        %v1644 = vpop.f32.mrb[0].mxu0
        %v1645 = vpop.f32.mrb[0].mxu0
        %v1646 = vpop.f32.mrb[0].mxu0
        %1647 = vdwg.mxu0
        %v1648 = vadd.f32 %v1462, %v1643
        %1649 = vst.msk [vmem:[%s823] sm:$0xff] %vm835, %v1648
        %s1650 = sand.u32 %s379, 1
        %s1651 = scalar_lea.sflag [#allocation4], %s1650
        %s1652 = sand.u32 %s379, 1
        %s1653 = smul.addr %s1652, 8
        %s1654 = scalar_lea.vmem [#allocation22], %s1653
        // Predicated region
        $region121: #{tpu_custom_call.1} parent=67 // pred_check
          %p1655 = pneg %p389
        $region122: #{tpu_custom_call.1} parent=67 // pred_check_branch
          %1657 = sbr.rel (%p1655) target = $region124
        $region123: #{tpu_custom_call.1} parent=67 // pred_region
          %s1659 = ssub.s32 128, 128
          %1660 = vsyncadd %s1651, %s1659
          %s1661 = smul.addr %s51, 128
          %s1662 = scalar_lea.hbm %s12, %s1661
          %s1664 = sshll.u32 %s1654, 4
          %s1665 = int_to_ptr.vmem [resolvable:$true] %s1664
          %1667 = dma.vmem_to_hbm [thread:$0]  %s1665, 128, %s1662, %s1651
        $region124: #{tpu_custom_call.1} parent=67 // pred_fallthru
          _
      $region68: #{tpu_custom_call.1} parent=5 // pred_fallthru
        _
      %p1668 = scmp.le.s32.totalorder 2, %s42
      // Predicated region
      $region125: #{tpu_custom_call.1} parent=5 // pred_check
        %p1669 = pneg %p1668
      $region126: #{tpu_custom_call.1} parent=5 // pred_check_branch
        %1671 = sbr.rel (%p1669) target = $region128
      $region127: #{tpu_custom_call.1} parent=5 // pred_region
        %s1672 = ssub.s32 %s42, 2
        // Predicated region
        $region129: #{tpu_custom_call.1} parent=127 // pred_check
          %p1673 = pneg %p395
        $region130: #{tpu_custom_call.1} parent=127 // pred_check_branch
          %1675 = sbr.rel (%p1673) target = $region132
        $region131: #{tpu_custom_call.1} parent=127 // pred_region
          %s1676 = sand.u32 %s380, 1
          %s1677 = scalar_lea.sflag [#allocation4], %s1676
          %s1678 = sand.u32 %s380, 1
          %s1679 = smul.addr %s1678, 8
          %s1680 = scalar_lea.vmem [#allocation22], %s1679
          %1681 = dma.done %s1677, 128
        $region132: #{tpu_custom_call.1} parent=127 // pred_fallthru
          _
      $region128: #{tpu_custom_call.1} parent=5 // pred_fallthru
        _
    $region6: #{tpu_custom_call.1} parent=1 // loop_footer
      %s46 = sadd.s32 1, %s42
    $region7: #{tpu_custom_call.1} parent=1 // loop_footer_branch
      %41 = sbr.rel target = $region3
    $region8: #{tpu_custom_call.1} parent=1 // loop_exit
      _
    %1682 = vsyncpa [#allocation3], 1
    %s1683 = scalar_lea.sflag [#allocation3], 1
    %1684 = vsyncpa %s1683, 1
    %1685 = vsyncpa [#allocation6], 1
    %s1686 = scalar_lea.sflag [#allocation6], 1
    %1687 = vsyncpa %s1686, 1
    %1688 = vsyncpa [#allocation9], 1
    %s1689 = scalar_lea.sflag [#allocation9], 1
    %1690 = vsyncpa %s1689, 1
    %1691 = vsyncpa [#allocation12], 1
    %s1692 = scalar_lea.sflag [#allocation12], 1
    %1693 = vsyncpa %s1692, 1
    %1694 = vsyncpa [#allocation15], 1
    %s1695 = scalar_lea.sflag [#allocation15], 1
    %1696 = vsyncpa %s1695, 1
    %1697 = vsyncpa [#allocation18], 1
    %s1698 = scalar_lea.sflag [#allocation18], 1
    %1699 = vsyncpa %s1698, 1
    %1700 = vsyncpa [#allocation21], 1
    %s1701 = scalar_lea.sflag [#allocation21], 1
    %1702 = vsyncpa %s1701, 1
    %1703 = vsyncpa [#allocation4], 1
    %s1704 = scalar_lea.sflag [#allocation4], 1
    %1705 = vsyncpa %s1704, 1

</llo_original>
